<compile_context>
chip_gen: v5e
topology: v5e:2x2
jax: 0.10.0
libtpu: 0.0.40
codegen_flags: <defaults>
</compile_context>

<pallas_src>
import math

import jax
import jax.numpy as jnp
from jax.experimental import pallas as pl
from jax.experimental.pallas import tpu as pltpu

# ------------------------- configuration (small test sizes) ----------------
VOCAB = 16                     # vocab_size
HID = 32                       # hidden_size
BBOX = 128                     # bbox_dimension
XY_SECT = 16                   # xy_distribution_size
XY_SHIFT = 4                   # log2(XY_SECT)
XY_DIM = XY_SECT * XY_SECT     # 256
TEMP = 0.4
BATCH = 8

LOG_FMAX = math.log(float(jnp.finfo(jnp.float32).max))   # ~88.7228

# packed head-1 slab layout (columns)
CLS_COL = 0                    # class logits live in cols [0, VOCAB)
XY1_COL = 128                  # xywh hidden (512)
WH1_COL = 640                  # wh hidden   (512)
HEAD1_COLS = 1152

# misc output slab layout (columns)
M_CLS = 0                      # class   [0, 16)
M_H1 = VOCAB                   # h1      [16, 48)
M_C1 = VOCAB + HID             # c1      [48, 80)
M_WH = VOCAB + 2 * HID         # wh_out  [80, 82)
M_TOPI = M_WH + 2              # topi    [82, 84)
MISC_W = 128
MISC_PAD = MISC_W - (M_TOPI + 2)


def _decoder_kernel(
    # --- data inputs ---
    front_ref,      # (B, 20)  = [target_xy(2) | target_wh(2) | onehot_l(16)]
    head_ref,       # (B, 34)  = [onehot_l(16) | next_l(16)   | next_xy(2)]
    h0_ref,         # (B, HID)
    c0_ref,         # (B, HID)
    gumbel_ref,     # (B, XY_DIM)
    # --- packed / folded parameters ---
    gfront_w_ref,   # (20, 4H)   front-end projections folded into gate weights
    w_hh_ref,       # (HID, 4H)
    b_gate_ref,     # (1, 4H)    b_ih + b_hh + folded front-end biases
    head1_wh_ref,   # (HID, 1152)   h1 -> [class | xy-hidden | wh-hidden]
    head1_wx_ref,   # (34, 1152)    head_in -> same slab (folded nxy projection)
    head1_b_ref,    # (1, 1152)
    xy_w2_ref,      # (512, XY_DIM)
    xy_b2_ref,      # (1, XY_DIM)
    wh_w2_ref,      # (512, 2)
    wh_b2_ref,      # (1, 2)
    # --- outputs ---
    xy_out_ref,     # (B, XY_DIM)
    misc_ref,       # (B, 128)
):
    f32 = jnp.float32
    H = HID

    # ---- single-step LSTM: split-and-sum matmuls, no lane concat ----------
    gates = (jnp.dot(front_ref[...], gfront_w_ref[...], preferred_element_type=f32)
             + jnp.dot(h0_ref[...], w_hh_ref[...], preferred_element_type=f32)
             + b_gate_ref[...])
    sg = jax.nn.sigmoid(gates)          # full (B, 4H) vreg on the EUP
    tg = jnp.tanh(gates)
    i_g = sg[:, 0 * H:1 * H]
    f_g = sg[:, 1 * H:2 * H]
    g_g = tg[:, 2 * H:3 * H]
    o_g = sg[:, 3 * H:4 * H]
    c1 = f_g * c0_ref[...] + i_g * g_g
    h1 = o_g * jnp.tanh(c1)

    # ---- all first-stage head linears fused into one (B, 1152) slab -------
    big = (jnp.dot(h1, head1_wh_ref[...], preferred_element_type=f32)
           + jnp.dot(head_ref[...], head1_wx_ref[...], preferred_element_type=f32)
           + head1_b_ref[...])
    class_pred = big[:, CLS_COL:CLS_COL + VOCAB]
    hdd = jnp.maximum(big[:, XY1_COL:XY1_COL + 512], 0.0)
    whh = jnp.maximum(big[:, WH1_COL:WH1_COL + 512], 0.0)

    # ---- xy head (second stage) --------------------------------------------
    xy_out = jnp.maximum(
        jnp.dot(hdd, xy_w2_ref[...], preferred_element_type=f32) + xy_b2_ref[...],
        0.0)
    xy_out_ref[...] = xy_out

    # torch.multinomial(clamp(exp(xy_out/T), 1e-5, fmax), 1) via Gumbel-max in
    # the log domain: xy_out >= 0 so the lower clamp never binds; the upper
    # clamp is min(xy_out/T, log(fmax)). Bit-equivalent sampling distribution.
    logits = jnp.minimum(xy_out * (1.0 / TEMP), LOG_FMAX)
    idx = jnp.argmax(logits + gumbel_ref[...], axis=1,
                     keepdims=True).astype(jnp.int32)
    xv = (idx & (XY_SECT - 1)).astype(f32) * (1.0 / XY_SECT)
    yv = (idx >> XY_SHIFT).astype(f32) * (1.0 / XY_SECT)

    # ---- wh head (second stage) --------------------------------------------
    wh = jax.nn.sigmoid(
        jnp.dot(whh, wh_w2_ref[...], preferred_element_type=f32) + wh_b2_ref[...])

    # ---- one lane-dense (B,128) output slab for all small outputs ----------
    pad = jnp.zeros((class_pred.shape[0], MISC_PAD), f32)
    misc_ref[...] = jnp.concatenate([class_pred, h1, c1, wh, xv, yv, pad], axis=1)


# --------------------------------------------------------------------------
# parameter construction (torch-layout) and packing / folding
# --------------------------------------------------------------------------
def init_params(key):
    """Deterministic synthetic parameters; weights stored as (in, out)."""
    keys = iter(jax.random.split(key, 32))

    def lin(din, dout, scale=0.1):
        kw, kb = jax.random.split(next(keys))
        w = jax.random.normal(kw, (din, dout), jnp.float32) * scale
        b = jax.random.normal(kb, (1, dout), jnp.float32) * scale
        return w, b

    p = {}
    p["emb"] = jax.random.normal(next(keys), (VOCAB, HID), jnp.float32) * 0.1
    p["xy_w"], p["xy_b"] = lin(2, BBOX)
    p["wh_w"], p["wh_b"] = lin(2, BBOX)
    lstm_in = HID + 2 * BBOX
    p["w_ih"], p["b_ih"] = lin(lstm_in, 4 * HID)
    p["w_hh"], p["b_hh"] = lin(HID, 4 * HID)
    p["cls_w"], p["cls_b"] = lin(2 * HID, VOCAB)
    p["xywh_w1"], p["xywh_b1"] = lin(HID + VOCAB, 512)
    p["xywh_w2"], p["xywh_b2"] = lin(512, XY_DIM)
    p["nxy_w"], p["nxy_b"] = lin(2, BBOX)
    p["whm_w1"], p["whm_b1"] = lin(HID + VOCAB + BBOX, 512)
    p["whm_w2"], p["whm_b2"] = lin(512, 2)
    return p


def pack_params(p):
    """One-time folding of the tiny front-end projections into the consuming
    matmuls + packing into a few lane-dense slabs for the kernel."""
    w_ih = p["w_ih"]                       # (288, 4H): rows [xy | wh | emb]
    w_ih_xy = w_ih[0:BBOX]
    w_ih_wh = w_ih[BBOX:2 * BBOX]
    w_ih_emb = w_ih[2 * BBOX:2 * BBOX + HID]

    gfront_w = jnp.concatenate(
        [p["xy_w"] @ w_ih_xy,              # rows 0:2   (target_xy)
         p["wh_w"] @ w_ih_wh,              # rows 2:4   (target_wh)
         p["emb"] @ w_ih_emb],             # rows 4:20  (onehot_l)
        axis=0)                            # (20, 4H)
    b_gate = p["b_ih"] + p["b_hh"] + p["xy_b"] @ w_ih_xy + p["wh_b"] @ w_ih_wh

    # head-1 slab: columns [class(0:128 pad) | xy-hidden(128:640) | wh-hidden(640:1152)]
    head1_wh = jnp.zeros((HID, HEAD1_COLS), jnp.float32)
    head1_wh = head1_wh.at[:, CLS_COL:CLS_COL + VOCAB].set(p["cls_w"][0:HID])
    head1_wh = head1_wh.at[:, XY1_COL:XY1_COL + 512].set(p["xywh_w1"][0:HID])
    head1_wh = head1_wh.at[:, WH1_COL:WH1_COL + 512].set(p["whm_w1"][0:HID])

    nxy_fold = p["nxy_w"] @ p["whm_w1"][HID + VOCAB:]          # (2, 512)
    head1_wx = jnp.zeros((2 * VOCAB + 2, HEAD1_COLS), jnp.float32)
    # onehot_l rows (0:16): embedding folded into class head
    head1_wx = head1_wx.at[0:VOCAB, CLS_COL:CLS_COL + VOCAB].set(
        p["emb"] @ p["cls_w"][HID:2 * HID])
    # next_l rows (16:32)
    head1_wx = head1_wx.at[VOCAB:2 * VOCAB, XY1_COL:XY1_COL + 512].set(
        p["xywh_w1"][HID:HID + VOCAB])
    head1_wx = head1_wx.at[VOCAB:2 * VOCAB, WH1_COL:WH1_COL + 512].set(
        p["whm_w1"][HID:HID + VOCAB])
    # next_xy rows (32:34): next_xy_input Linear folded into wh-hidden weights
    head1_wx = head1_wx.at[2 * VOCAB:2 * VOCAB + 2, WH1_COL:WH1_COL + 512].set(
        nxy_fold)

    head1_b = jnp.zeros((1, HEAD1_COLS), jnp.float32)
    head1_b = head1_b.at[:, CLS_COL:CLS_COL + VOCAB].set(p["cls_b"])
    head1_b = head1_b.at[:, XY1_COL:XY1_COL + 512].set(p["xywh_b1"])
    head1_b = head1_b.at[:, WH1_COL:WH1_COL + 512].set(
        p["whm_b1"] + p["nxy_b"] @ p["whm_w1"][HID + VOCAB:])

    return {
        "gfront_w": gfront_w, "w_hh": p["w_hh"], "b_gate": b_gate,
        "head1_wh": head1_wh, "head1_wx": head1_wx, "head1_b": head1_b,
        "xy_w2": p["xywh_w2"], "xy_b2": p["xywh_b2"],
        "wh_w2": p["whm_w2"], "wh_b2": p["whm_b2"],
    }


PACKED_ORDER = ["gfront_w", "w_hh", "b_gate", "head1_wh", "head1_wx", "head1_b",
                "xy_w2", "xy_b2", "wh_w2", "wh_b2"]


@jax.jit
def decoder_rnn_forward(packed, target_l, target_x, target_y, target_w,
                        target_h, hidden, next_l, next_xy, gumbel):
    """Builds packed lane-dense inputs, calls the fused kernel, unpacks outputs."""
    B = target_l.shape[0]
    h0 = hidden[0].reshape(B, HID)
    c0 = hidden[1].reshape(B, HID)

    onehot_l = jax.nn.one_hot(target_l, VOCAB, dtype=jnp.float32)
    target_xy = jnp.stack([target_x, target_y], axis=1).astype(jnp.float32)
    target_wh = jnp.stack([target_w, target_h], axis=1).astype(jnp.float32)

    front_in = jnp.concatenate([target_xy, target_wh, onehot_l], axis=1)       # (B, 20)
    head_in = jnp.concatenate([onehot_l, next_l.astype(jnp.float32),
                               next_xy.astype(jnp.float32)], axis=1)           # (B, 34)

    data_inputs = (front_in, head_in, h0, c0, gumbel.astype(jnp.float32))
    weight_inputs = tuple(packed[k] for k in PACKED_ORDER)
    all_inputs = data_inputs + weight_inputs

    out_shape = (
        jax.ShapeDtypeStruct((B, XY_DIM), jnp.float32),   # xy_out
        jax.ShapeDtypeStruct((B, MISC_W), jnp.float32),   # packed small outputs
    )

    vmem_spec = pl.BlockSpec(memory_space=pltpu.MemorySpace.VMEM)
    xy_out, misc = pl.pallas_call(
        _decoder_kernel,
        out_shape=out_shape,
        in_specs=[vmem_spec] * len(all_inputs),
        out_specs=tuple(vmem_spec for _ in out_shape),
        compiler_params=pltpu.CompilerParams(vmem_limit_bytes=8 << 20),
    )(*all_inputs)

    class_pred = misc[:, M_CLS:M_CLS + VOCAB]
    h1 = misc[:, M_H1:M_H1 + HID]
    c1 = misc[:, M_C1:M_C1 + HID]
    wh_out = misc[:, M_WH:M_WH + 2]
    topi = misc[:, M_TOPI:M_TOPI + 2]
    hidden_rnn = (h1.reshape(1, B, HID), c1.reshape(1, B, HID))
    return class_pred, xy_out, wh_out, hidden_rnn, topi


# --------------------------------------------------------------------------
# pure-JAX reference (un-folded math) used only for correctness validation
# --------------------------------------------------------------------------
def reference_forward(p, target_l, target_x, target_y, target_w, target_h,
                      hidden, next_l, next_xy, gumbel):
    B = target_l.shape[0]
    h0 = hidden[0].reshape(B, HID)
    c0 = hidden[1].reshape(B, HID)
    onehot_l = jax.nn.one_hot(target_l, VOCAB, dtype=jnp.float32)
    emb_l = onehot_l @ p["emb"]
    target_xy = jnp.stack([target_x, target_y], 1)
    target_wh = jnp.stack([target_w, target_h], 1)
    xy_in = target_xy @ p["xy_w"] + p["xy_b"]
    wh_in = target_wh @ p["wh_w"] + p["wh_b"]
    x = jnp.concatenate([xy_in, wh_in, emb_l], 1)
    gates = x @ p["w_ih"] + p["b_ih"] + h0 @ p["w_hh"] + p["b_hh"]
    i = jax.nn.sigmoid(gates[:, :HID])
    f = jax.nn.sigmoid(gates[:, HID:2 * HID])
    g = jnp.tanh(gates[:, 2 * HID:3 * HID])
    o = jax.nn.sigmoid(gates[:, 3 * HID:4 * HID])
    c1 = f * c0 + i * g
    h1 = o * jnp.tanh(c1)
    class_pred = jnp.concatenate([h1, emb_l], 1) @ p["cls_w"] + p["cls_b"]
    xy_hidden = jnp.concatenate([h1, next_l], 1)
    hdd = jax.nn.relu(xy_hidden @ p["xywh_w1"] + p["xywh_b1"])
    xy_out = jax.nn.relu(hdd @ p["xywh_w2"] + p["xywh_b2"])
    nxy = next_xy @ p["nxy_w"] + p["nxy_b"]
    wh_hidden = jnp.concatenate([xy_hidden, nxy], 1)
    whh = jax.nn.relu(wh_hidden @ p["whm_w1"] + p["whm_b1"])
    wh_out = jax.nn.sigmoid(whh @ p["whm_w2"] + p["whm_b2"])
    return class_pred, xy_out, wh_out, h1, c1


if __name__ == "__main__":
    key = jax.random.PRNGKey(0)
    (kp, kl, kx, ky, kw, kh, kh0, kc0, knl, knxy, kg) = jax.random.split(key, 11)

    params = init_params(kp)
    packed = jax.tree_util.tree_map(jax.device_put, pack_params(params))

    target_l = jax.random.randint(kl, (BATCH,), 0, VOCAB)
    target_x = jax.random.uniform(kx, (BATCH,), jnp.float32)
    target_y = jax.random.uniform(ky, (BATCH,), jnp.float32)
    target_w = jax.random.uniform(kw, (BATCH,), jnp.float32)
    target_h = jax.random.uniform(kh, (BATCH,), jnp.float32)
    h0 = jax.random.normal(kh0, (1, BATCH, HID), jnp.float32) * 0.1
    c0 = jax.random.normal(kc0, (1, BATCH, HID), jnp.float32) * 0.1
    next_l = jax.nn.one_hot(
        jax.random.randint(knl, (BATCH,), 0, VOCAB), VOCAB, dtype=jnp.float32)
    next_xy = jax.random.uniform(knxy, (BATCH, 2), jnp.float32)
    # Gumbel(0,1) noise used inside the kernel for torch.multinomial(., 1).
    gumbel = -jnp.log(-jnp.log(
        jax.random.uniform(kg, (BATCH, XY_DIM), jnp.float32,
                           minval=1e-6, maxval=1.0 - 1e-6)))

    class_pred, xy_out, wh_out, hidden_rnn, topi = decoder_rnn_forward(
        packed, target_l, target_x, target_y, target_w, target_h,
        (h0, c0), next_l, next_xy, gumbel)
    jax.block_until_ready((class_pred, xy_out, wh_out, hidden_rnn, topi))

    # shape / sanity checks
    assert class_pred.shape == (BATCH, VOCAB)
    assert xy_out.shape == (BATCH, XY_DIM)
    assert wh_out.shape == (BATCH, 2)
    assert hidden_rnn[0].shape == (1, BATCH, HID)
    assert hidden_rnn[1].shape == (1, BATCH, HID)
    assert topi.shape == (BATCH, 2)
    assert bool(jnp.all(jnp.isfinite(class_pred)))
    assert bool(jnp.all(jnp.isfinite(xy_out)))
    assert bool(jnp.all((wh_out >= 0) & (wh_out <= 1)))
    assert bool(jnp.all((topi >= 0) & (topi < 1)))

    # numerical check of the weight folding against the un-folded reference
    r_cls, r_xy, r_wh, r_h1, r_c1 = reference_forward(
        params, target_l, target_x, target_y, target_w, target_h,
        (h0, c0), next_l, next_xy, gumbel)
    assert bool(jnp.allclose(class_pred, r_cls, rtol=1e-2, atol=1e-2))
    assert bool(jnp.allclose(xy_out, r_xy, rtol=1e-2, atol=1e-2))
    assert bool(jnp.allclose(wh_out, r_wh, rtol=1e-2, atol=1e-2))
    assert bool(jnp.allclose(hidden_rnn[0].reshape(BATCH, HID), r_h1,
                             rtol=1e-2, atol=1e-2))
    assert bool(jnp.allclose(hidden_rnn[1].reshape(BATCH, HID), r_c1,
                             rtol=1e-2, atol=1e-2))

    print("KERNEL_OK")
</pallas_src>

<mosaic_0001>
module attributes {stable_mosaic.version = 11 : i64} {
  func.func @_decoder_kernel(%arg0: memref<8x20xf32, #tpu.memory_space<vmem>>, %arg1: memref<8x34xf32, #tpu.memory_space<vmem>>, %arg2: memref<8x32xf32, #tpu.memory_space<vmem>>, %arg3: memref<8x32xf32, #tpu.memory_space<vmem>>, %arg4: memref<8x256xf32, #tpu.memory_space<vmem>>, %arg5: memref<20x128xf32, #tpu.memory_space<vmem>>, %arg6: memref<32x128xf32, #tpu.memory_space<vmem>>, %arg7: memref<1x128xf32, #tpu.memory_space<vmem>>, %arg8: memref<32x1152xf32, #tpu.memory_space<vmem>>, %arg9: memref<34x1152xf32, #tpu.memory_space<vmem>>, %arg10: memref<1x1152xf32, #tpu.memory_space<vmem>>, %arg11: memref<512x256xf32, #tpu.memory_space<vmem>>, %arg12: memref<1x256xf32, #tpu.memory_space<vmem>>, %arg13: memref<512x2xf32, #tpu.memory_space<vmem>>, %arg14: memref<1x2xf32, #tpu.memory_space<vmem>>, %arg15: memref<8x256xf32, #tpu.memory_space<vmem>>, %arg16: memref<8x128xf32, #tpu.memory_space<vmem>>) attributes {dimension_semantics = [], scalar_prefetch = 0 : i64, scratch_operands = 0 : i64, tpu.core_type = #tpu.core_type<tc>} {
    %c0 = arith.constant 0 : index
    %c0_0 = arith.constant 0 : index
    %0 = vector.load %arg0[%c0, %c0_0] : memref<8x20xf32, #tpu.memory_space<vmem>>, vector<8x20xf32>
    %c0_1 = arith.constant 0 : index
    %c0_2 = arith.constant 0 : index
    %1 = vector.load %arg5[%c0_1, %c0_2] : memref<20x128xf32, #tpu.memory_space<vmem>>, vector<20x128xf32>
    %cst = arith.constant dense<0.000000e+00> : vector<8x128xf32>
    %2 = tpu.matmul %0, %1, %cst {dimension_numbers = #tpu.dot_dimension_numbers<[1], [0], [0], [1], [0, 0, 1, 1], [], []>} : vector<8x20xf32>, vector<20x128xf32>, vector<8x128xf32> -> vector<8x128xf32>
    %c0_3 = arith.constant 0 : index
    %c0_4 = arith.constant 0 : index
    %3 = vector.load %arg2[%c0_3, %c0_4] : memref<8x32xf32, #tpu.memory_space<vmem>>, vector<8x32xf32>
    %c0_5 = arith.constant 0 : index
    %c0_6 = arith.constant 0 : index
    %4 = vector.load %arg6[%c0_5, %c0_6] : memref<32x128xf32, #tpu.memory_space<vmem>>, vector<32x128xf32>
    %cst_7 = arith.constant dense<0.000000e+00> : vector<8x128xf32>
    %5 = tpu.matmul %3, %4, %cst_7 {dimension_numbers = #tpu.dot_dimension_numbers<[1], [0], [0], [1], [0, 0, 1, 1], [], []>} : vector<8x32xf32>, vector<32x128xf32>, vector<8x128xf32> -> vector<8x128xf32>
    %6 = arith.addf %2, %5 : vector<8x128xf32>
    %c0_8 = arith.constant 0 : index
    %c0_9 = arith.constant 0 : index
    %7 = vector.load %arg7[%c0_8, %c0_9] : memref<1x128xf32, #tpu.memory_space<vmem>>, vector<1x128xf32>
    %8 = vector.broadcast %7 : vector<1x128xf32> to vector<8x128xf32>
    %9 = arith.addf %6, %8 : vector<8x128xf32>
    %10 = arith.negf %9 : vector<8x128xf32>
    %11 = math.exp %10 : vector<8x128xf32>
    %cst_10 = arith.constant 1.000000e+00 : f32
    %12 = vector.broadcast %cst_10 : f32 to vector<8x128xf32>
    %13 = arith.addf %12, %11 : vector<8x128xf32>
    %14 = arith.divf %12, %13 : vector<8x128xf32>
    %15 = math.tanh %9 : vector<8x128xf32>
    %16 = vector.extract_strided_slice %14 {offsets = [0, 0], sizes = [8, 32], strides = [1, 1]} : vector<8x128xf32> to vector<8x32xf32>
    %17 = vector.extract_strided_slice %14 {offsets = [0, 32], sizes = [8, 32], strides = [1, 1]} : vector<8x128xf32> to vector<8x32xf32>
    %18 = vector.extract_strided_slice %15 {offsets = [0, 64], sizes = [8, 32], strides = [1, 1]} : vector<8x128xf32> to vector<8x32xf32>
    %19 = vector.extract_strided_slice %14 {offsets = [0, 96], sizes = [8, 32], strides = [1, 1]} : vector<8x128xf32> to vector<8x32xf32>
    %c0_11 = arith.constant 0 : index
    %c0_12 = arith.constant 0 : index
    %20 = vector.load %arg3[%c0_11, %c0_12] : memref<8x32xf32, #tpu.memory_space<vmem>>, vector<8x32xf32>
    %21 = arith.mulf %17, %20 : vector<8x32xf32>
    %22 = arith.mulf %16, %18 : vector<8x32xf32>
    %23 = arith.addf %21, %22 : vector<8x32xf32>
    %24 = math.tanh %23 : vector<8x32xf32>
    %25 = arith.mulf %19, %24 : vector<8x32xf32>
    %c0_13 = arith.constant 0 : index
    %c0_14 = arith.constant 0 : index
    %26 = vector.load %arg8[%c0_13, %c0_14] : memref<32x1152xf32, #tpu.memory_space<vmem>>, vector<32x1152xf32>
    %cst_15 = arith.constant dense<0.000000e+00> : vector<8x1152xf32>
    %27 = tpu.matmul %25, %26, %cst_15 {dimension_numbers = #tpu.dot_dimension_numbers<[1], [0], [0], [1], [0, 0, 1, 1], [], []>} : vector<8x32xf32>, vector<32x1152xf32>, vector<8x1152xf32> -> vector<8x1152xf32>
    %c0_16 = arith.constant 0 : index
    %c0_17 = arith.constant 0 : index
    %28 = vector.load %arg1[%c0_16, %c0_17] : memref<8x34xf32, #tpu.memory_space<vmem>>, vector<8x34xf32>
    %c0_18 = arith.constant 0 : index
    %c0_19 = arith.constant 0 : index
    %29 = vector.load %arg9[%c0_18, %c0_19] : memref<34x1152xf32, #tpu.memory_space<vmem>>, vector<34x1152xf32>
    %cst_20 = arith.constant dense<0.000000e+00> : vector<8x1152xf32>
    %30 = tpu.matmul %28, %29, %cst_20 {dimension_numbers = #tpu.dot_dimension_numbers<[1], [0], [0], [1], [0, 0, 1, 1], [], []>} : vector<8x34xf32>, vector<34x1152xf32>, vector<8x1152xf32> -> vector<8x1152xf32>
    %31 = arith.addf %27, %30 : vector<8x1152xf32>
    %c0_21 = arith.constant 0 : index
    %c0_22 = arith.constant 0 : index
    %32 = vector.load %arg10[%c0_21, %c0_22] : memref<1x1152xf32, #tpu.memory_space<vmem>>, vector<1x1152xf32>
    %33 = vector.broadcast %32 : vector<1x1152xf32> to vector<8x1152xf32>
    %34 = arith.addf %31, %33 : vector<8x1152xf32>
    %35 = vector.extract_strided_slice %34 {offsets = [0, 0], sizes = [8, 16], strides = [1, 1]} : vector<8x1152xf32> to vector<8x16xf32>
    %36 = vector.extract_strided_slice %34 {offsets = [0, 128], sizes = [8, 512], strides = [1, 1]} : vector<8x1152xf32> to vector<8x512xf32>
    %cst_23 = arith.constant 0.000000e+00 : f32
    %37 = vector.broadcast %cst_23 : f32 to vector<8x512xf32>
    %38 = arith.maximumf %36, %37 : vector<8x512xf32>
    %39 = vector.extract_strided_slice %34 {offsets = [0, 640], sizes = [8, 512], strides = [1, 1]} : vector<8x1152xf32> to vector<8x512xf32>
    %cst_24 = arith.constant 0.000000e+00 : f32
    %40 = vector.broadcast %cst_24 : f32 to vector<8x512xf32>
    %41 = arith.maximumf %39, %40 : vector<8x512xf32>
    %c0_25 = arith.constant 0 : index
    %c0_26 = arith.constant 0 : index
    %42 = vector.load %arg11[%c0_25, %c0_26] : memref<512x256xf32, #tpu.memory_space<vmem>>, vector<512x256xf32>
    %cst_27 = arith.constant dense<0.000000e+00> : vector<8x256xf32>
    %43 = tpu.matmul %38, %42, %cst_27 {dimension_numbers = #tpu.dot_dimension_numbers<[1], [0], [0], [1], [0, 0, 1, 1], [], []>} : vector<8x512xf32>, vector<512x256xf32>, vector<8x256xf32> -> vector<8x256xf32>
    %c0_28 = arith.constant 0 : index
    %c0_29 = arith.constant 0 : index
    %44 = vector.load %arg12[%c0_28, %c0_29] : memref<1x256xf32, #tpu.memory_space<vmem>>, vector<1x256xf32>
    %45 = vector.broadcast %44 : vector<1x256xf32> to vector<8x256xf32>
    %46 = arith.addf %43, %45 : vector<8x256xf32>
    %cst_30 = arith.constant 0.000000e+00 : f32
    %47 = vector.broadcast %cst_30 : f32 to vector<8x256xf32>
    %48 = arith.maximumf %46, %47 : vector<8x256xf32>
    %c0_31 = arith.constant 0 : index
    %c0_32 = arith.constant 0 : index
    %49 = vector.load %arg15[%c0_31, %c0_32] : memref<8x256xf32, #tpu.memory_space<vmem>>, vector<8x256xf32>
    tpu.vector_store %arg15[%c0_31, %c0_32], %48 {strides = array<i32>} : memref<8x256xf32, #tpu.memory_space<vmem>>, vector<8x256xf32>,
    %cst_33 = arith.constant 2.500000e+00 : f32
    %50 = vector.broadcast %cst_33 : f32 to vector<8x256xf32>
    %51 = arith.mulf %48, %50 : vector<8x256xf32>
    %cst_34 = arith.constant 88.7228394 : f32
    %52 = vector.broadcast %cst_34 : f32 to vector<8x256xf32>
    %53 = arith.minimumf %51, %52 : vector<8x256xf32>
    %c0_35 = arith.constant 0 : index
    %c0_36 = arith.constant 0 : index
    %54 = vector.load %arg4[%c0_35, %c0_36] : memref<8x256xf32, #tpu.memory_space<vmem>>, vector<8x256xf32>
    %55 = arith.addf %53, %54 : vector<8x256xf32>
    %56 = tpu.reduce_index %55 {axis = 1 : i32, kind = #tpu.reduction_kind<arg_max>} : vector<8x256xf32> -> vector<8xi32>
    %57 = vector.shape_cast %56 : vector<8xi32> to vector<8x1xi32>
    %c15_i32 = arith.constant 15 : i32
    %58 = vector.broadcast %c15_i32 : i32 to vector<8x1xi32>
    %59 = arith.andi %57, %58 : vector<8x1xi32>
    %60 = arith.sitofp %59 : vector<8x1xi32> to vector<8x1xf32>
    %cst_37 = arith.constant 6.250000e-02 : f32
    %61 = vector.broadcast %cst_37 : f32 to vector<8x1xf32>
    %62 = arith.mulf %60, %61 : vector<8x1xf32>
    %c4_i32 = arith.constant 4 : i32
    %63 = vector.broadcast %c4_i32 : i32 to vector<8x1xi32>
    %64 = arith.shrsi %57, %63 : vector<8x1xi32>
    %65 = arith.sitofp %64 : vector<8x1xi32> to vector<8x1xf32>
    %cst_38 = arith.constant 6.250000e-02 : f32
    %66 = vector.broadcast %cst_38 : f32 to vector<8x1xf32>
    %67 = arith.mulf %65, %66 : vector<8x1xf32>
    %c0_39 = arith.constant 0 : index
    %c0_40 = arith.constant 0 : index
    %68 = vector.load %arg13[%c0_39, %c0_40] : memref<512x2xf32, #tpu.memory_space<vmem>>, vector<512x2xf32>
    %cst_41 = arith.constant dense<0.000000e+00> : vector<8x2xf32>
    %69 = tpu.matmul %41, %68, %cst_41 {dimension_numbers = #tpu.dot_dimension_numbers<[1], [0], [0], [1], [0, 0, 1, 1], [], []>} : vector<8x512xf32>, vector<512x2xf32>, vector<8x2xf32> -> vector<8x2xf32>
    %c0_42 = arith.constant 0 : index
    %c0_43 = arith.constant 0 : index
    %70 = vector.load %arg14[%c0_42, %c0_43] : memref<1x2xf32, #tpu.memory_space<vmem>>, vector<1x2xf32>
    %71 = vector.broadcast %70 : vector<1x2xf32> to vector<8x2xf32>
    %72 = arith.addf %69, %71 : vector<8x2xf32>
    %73 = arith.negf %72 : vector<8x2xf32>
    %74 = math.exp %73 : vector<8x2xf32>
    %cst_44 = arith.constant 1.000000e+00 : f32
    %75 = vector.broadcast %cst_44 : f32 to vector<8x2xf32>
    %76 = arith.addf %75, %74 : vector<8x2xf32>
    %77 = arith.divf %75, %76 : vector<8x2xf32>
    %cst_45 = arith.constant 0.000000e+00 : f32
    %78 = vector.broadcast %cst_45 : f32 to vector<8x44xf32>
    %79 = tpu.concatenate %35, %25, %23, %77, %62, %67, %78 in 1 : vector<8x16xf32>, vector<8x32xf32>, vector<8x32xf32>, vector<8x2xf32>, vector<8x1xf32>, vector<8x1xf32>, vector<8x44xf32> -> vector<8x128xf32>
    %c0_46 = arith.constant 0 : index
    %c0_47 = arith.constant 0 : index
    %80 = vector.load %arg16[%c0_46, %c0_47] : memref<8x128xf32, #tpu.memory_space<vmem>>, vector<8x128xf32>
    tpu.vector_store %arg16[%c0_46, %c0_47], %79 {strides = array<i32>} : memref<8x128xf32, #tpu.memory_space<vmem>>, vector<8x128xf32>,
    return
  }
}

</mosaic_0001>

<llo_original>
// kernel: decoder_rnn_forward.1
$region0: #{decoder_rnn_forward.1}
  #allocation0 [shape = 'u32[]', space=smem, size = 0x4, offset = 0x4, fixed_abs, tag = 'smem constant byte address 0x4 - core index']
  #allocation1 [shape = 'u32[72,128]{1,0:T(1,128)}', space=vmem, size = 0x9000, scoped, tag = 'internal scratch']
  %s0 = inlined_call_operand.vmem [shape: f32[8,20], index: 0, kind: input, shape index: {}]
  %s1 = inlined_call_operand.vmem [shape: f32[8,34], index: 1, kind: input, shape index: {}]
  %s2 = inlined_call_operand.vmem [shape: f32[8,32], index: 2, kind: input, shape index: {}]
  %s3 = inlined_call_operand.vmem [shape: f32[8,32], index: 3, kind: input, shape index: {}]
  %s4 = inlined_call_operand.vmem [shape: f32[8,256], index: 4, kind: input, shape index: {}]
  %s5 = inlined_call_operand.vmem [shape: f32[20,128], index: 5, kind: input, shape index: {}]
  %s6 = inlined_call_operand.vmem [shape: f32[32,128], index: 6, kind: input, shape index: {}]
  %s7 = inlined_call_operand.vmem [shape: f32[1,128], index: 7, kind: input, shape index: {}]
  %s8 = inlined_call_operand.hbm [shape: f32[32,1152], index: 8, kind: input, shape index: {}]
  %s9 = inlined_call_operand.vmem [shape: f32[34,1152], index: 9, kind: input, shape index: {}]
  %s10 = inlined_call_operand.vmem [shape: f32[1,1152], index: 10, kind: input, shape index: {}]
  %s11 = inlined_call_operand.hbm [shape: f32[512,256], index: 11, kind: input, shape index: {}]
  %s12 = inlined_call_operand.vmem [shape: f32[1,256], index: 12, kind: input, shape index: {}]
  %s13 = inlined_call_operand.vmem [shape: f32[512,2], index: 13, kind: input, shape index: {}]
  %s14 = inlined_call_operand.vmem [shape: f32[1,2], index: 14, kind: input, shape index: {}]
  %s15 = inlined_call_operand.hbm [shape: f32[8,256], index: 15, kind: output, shape index: {0}]
  %s16 = inlined_call_operand.vmem [shape: f32[8,128], index: 16, kind: output, shape index: {1}]
  %17 = xla_tuple %s15, %s16
  %s18 = sld [smem:[#allocation0]]
  $region86: #{decoder_rnn_forward.1} parent=0
    _
  %s20 = ssub.s32 1, %s18
  %s21 = scalar_select 0, %s20, %s18
  $region1: #{decoder_rnn_forward.1} parent=0
    #allocation2 [shape = 'u8[147456]{0}', space=vmem, size = 0x24000, scoped, tag = 'input window, operand 8, single buffered']
    #allocation3 [shape = 's32[1]{0}', space=sflag, size = 0x4, scoped, tag = 'scoped memory for decoder_rnn_forward.1']
    #allocation4 [shape = 's32[1]{0}', space=sflag, size = 0x4, scoped, tag = 'scoped memory for decoder_rnn_forward.1']
    #allocation5 [shape = 'u8[524288]{0}', space=vmem, size = 0x80000, scoped, tag = 'input window, operand 11, single buffered']
    #allocation6 [shape = 's32[1]{0}', space=sflag, size = 0x4, scoped, tag = 'scoped memory for decoder_rnn_forward.1']
    #allocation7 [shape = 'u8[8192]{0}', space=vmem, size = 0x2000, scoped, tag = 'output window, operand 0, single buffered']
    %22 = vsyncpa [#allocation3], 0
    %23 = vsyncpa [#allocation6], 0
    %24 = vsyncpa [#allocation4], 0
    // Predicated region
    $region2: #{decoder_rnn_forward.1} parent=1 // pred_check
      _
    $region3: #{decoder_rnn_forward.1} parent=1 // pred_check_branch
      %26 = sbr.rel (0) target = $region5
    $region4: #{decoder_rnn_forward.1} parent=1 // pred_region
      _
    $region5: #{decoder_rnn_forward.1} parent=1 // pred_fallthru
      _
    // Predicated region
    $region6: #{decoder_rnn_forward.1} parent=1 // pred_check
      _
    $region7: #{decoder_rnn_forward.1} parent=1 // pred_check_branch
      %28 = sbr.rel (0) target = $region9
    $region8: #{decoder_rnn_forward.1} parent=1 // pred_region
      _
    $region9: #{decoder_rnn_forward.1} parent=1 // pred_fallthru
      _
    // Predicated region
    $region10: #{decoder_rnn_forward.1} parent=1 // pred_check
      _
    $region11: #{decoder_rnn_forward.1} parent=1 // pred_check_branch
      %30 = sbr.rel (0) target = $region13
    $region12: #{decoder_rnn_forward.1} parent=1 // pred_region
      _
    $region13: #{decoder_rnn_forward.1} parent=1 // pred_fallthru
      _
    // Predicated region
    $region14: #{decoder_rnn_forward.1} parent=1 // pred_check
      _
    $region15: #{decoder_rnn_forward.1} parent=1 // pred_check_branch
      %32 = sbr.rel (0) target = $region17
    $region16: #{decoder_rnn_forward.1} parent=1 // pred_region
      _
    $region17: #{decoder_rnn_forward.1} parent=1 // pred_fallthru
      _
    // Predicated region
    $region18: #{decoder_rnn_forward.1} parent=1 // pred_check
      _
    $region19: #{decoder_rnn_forward.1} parent=1 // pred_check_branch
      %34 = sbr.rel (0) target = $region21
    $region20: #{decoder_rnn_forward.1} parent=1 // pred_region
      _
    $region21: #{decoder_rnn_forward.1} parent=1 // pred_fallthru
      _
    // Predicated region
    $region22: #{decoder_rnn_forward.1} parent=1 // pred_check
      _
    $region23: #{decoder_rnn_forward.1} parent=1 // pred_check_branch
      %36 = sbr.rel (0) target = $region25
    $region24: #{decoder_rnn_forward.1} parent=1 // pred_region
      _
    $region25: #{decoder_rnn_forward.1} parent=1 // pred_fallthru
      _
    // Predicated region
    $region26: #{decoder_rnn_forward.1} parent=1 // pred_check
      _
    $region27: #{decoder_rnn_forward.1} parent=1 // pred_check_branch
      %38 = sbr.rel (0) target = $region29
    $region28: #{decoder_rnn_forward.1} parent=1 // pred_region
      _
    $region29: #{decoder_rnn_forward.1} parent=1 // pred_fallthru
      _
    // Predicated region
    $region30: #{decoder_rnn_forward.1} parent=1 // pred_check
      _
    $region31: #{decoder_rnn_forward.1} parent=1 // pred_check_branch
      %40 = sbr.rel (0) target = $region33
    $region32: #{decoder_rnn_forward.1} parent=1 // pred_region
      _
    $region33: #{decoder_rnn_forward.1} parent=1 // pred_fallthru
      _
    // Predicated region
    $region34: #{decoder_rnn_forward.1} parent=1 // pred_check
      _
    $region35: #{decoder_rnn_forward.1} parent=1 // pred_check_branch
      %42 = sbr.rel (0) target = $region37
    $region36: #{decoder_rnn_forward.1} parent=1 // pred_region
      %44 = vsyncadd [#allocation3], 0
      %s45 = sshll.u32 %s8, 4
      %s46 = int_to_ptr.hbm [resolvable:$true] %s45
      %s47 = sshll.u32 [#allocation2], 4
      %s48 = int_to_ptr.vmem [resolvable:$true] %s47
      %53 = dma.hbm_to_vmem [thread:$0]  %s46, 4608, %s48, [#allocation3], 1152, 1152, 72
    $region37: #{decoder_rnn_forward.1} parent=1 // pred_fallthru
      _
    // Predicated region
    $region38: #{decoder_rnn_forward.1} parent=1 // pred_check
      _
    $region39: #{decoder_rnn_forward.1} parent=1 // pred_check_branch
      %55 = sbr.rel (0) target = $region41
    $region40: #{decoder_rnn_forward.1} parent=1 // pred_region
      _
    $region41: #{decoder_rnn_forward.1} parent=1 // pred_fallthru
      _
    // Predicated region
    $region42: #{decoder_rnn_forward.1} parent=1 // pred_check
      _
    $region43: #{decoder_rnn_forward.1} parent=1 // pred_check_branch
      %57 = sbr.rel (0) target = $region45
    $region44: #{decoder_rnn_forward.1} parent=1 // pred_region
      _
    $region45: #{decoder_rnn_forward.1} parent=1 // pred_fallthru
      _
    // Predicated region
    $region46: #{decoder_rnn_forward.1} parent=1 // pred_check
      _
    $region47: #{decoder_rnn_forward.1} parent=1 // pred_check_branch
      %59 = sbr.rel (0) target = $region49
    $region48: #{decoder_rnn_forward.1} parent=1 // pred_region
      %61 = vsyncadd [#allocation6], 0
      %s62 = sshll.u32 %s11, 4
      %s63 = int_to_ptr.hbm [resolvable:$true] %s62
      %s64 = sshll.u32 [#allocation5], 4
      %s65 = int_to_ptr.vmem [resolvable:$true] %s64
      %70 = dma.hbm_to_vmem [thread:$0]  %s63, 16384, %s65, [#allocation6], 256, 256, 16
    $region49: #{decoder_rnn_forward.1} parent=1 // pred_fallthru
      _
    // Predicated region
    $region50: #{decoder_rnn_forward.1} parent=1 // pred_check
      _
    $region51: #{decoder_rnn_forward.1} parent=1 // pred_check_branch
      %72 = sbr.rel (0) target = $region53
    $region52: #{decoder_rnn_forward.1} parent=1 // pred_region
      _
    $region53: #{decoder_rnn_forward.1} parent=1 // pred_fallthru
      _
    // Predicated region
    $region54: #{decoder_rnn_forward.1} parent=1 // pred_check
      _
    $region55: #{decoder_rnn_forward.1} parent=1 // pred_check_branch
      %74 = sbr.rel (0) target = $region57
    $region56: #{decoder_rnn_forward.1} parent=1 // pred_region
      _
    $region57: #{decoder_rnn_forward.1} parent=1 // pred_fallthru
      _
    // Predicated region
    $region58: #{decoder_rnn_forward.1} parent=1 // pred_check
      _
    $region59: #{decoder_rnn_forward.1} parent=1 // pred_check_branch
      %76 = sbr.rel (0) target = $region61
    $region60: #{decoder_rnn_forward.1} parent=1 // pred_region
      _
    $region61: #{decoder_rnn_forward.1} parent=1 // pred_fallthru
      _
    // Predicated region
    $region62: #{decoder_rnn_forward.1} parent=1 // pred_check
      _
    $region63: #{decoder_rnn_forward.1} parent=1 // pred_check_branch
      %78 = sbr.rel (0) target = $region65
    $region64: #{decoder_rnn_forward.1} parent=1 // pred_region
      %80 = dma.done [#allocation3], 4608
    $region65: #{decoder_rnn_forward.1} parent=1 // pred_fallthru
      _
    // Predicated region
    $region66: #{decoder_rnn_forward.1} parent=1 // pred_check
      _
    $region67: #{decoder_rnn_forward.1} parent=1 // pred_check_branch
      %82 = sbr.rel (0) target = $region69
    $region68: #{decoder_rnn_forward.1} parent=1 // pred_region
      %84 = dma.done [#allocation6], 16384
    $region69: #{decoder_rnn_forward.1} parent=1 // pred_fallthru
      _
    %v85 = vld [vmem:[%s0] sm:$0xff]
    %v86 = vld [vmem:[%s5] sm:$0xff]
    %v87 = vld [vmem:[%s5 + $0x8] sm:$0xff]
    %v88 = vld [vmem:[%s5 + $0x10] sm:$0xf]
    %v89 = vld [vmem:[%s2] sm:$0xff]
    %v90 = vld [vmem:[%s6] sm:$0xff]
    %v91 = vld [vmem:[%s6 + $0x8] sm:$0xff]
    %v92 = vld [vmem:[%s6 + $0x10] sm:$0xff]
    %v93 = vld [vmem:[%s6 + $0x18] sm:$0xff]
    %vm94 = vcmask 261120
    %v96 = vsel %vm94, %v89, 0
    %98 = vmatpush.msra.mxu0 0.0
    %99 = vmatpush.msra.mxu0 0.0
    %100 = vmatpush.msra.mxu0 0.0
    %101 = vmatpush.msra.mxu0 0.0
    %102 = vmatpush.msra.mxu0 0.0
    %103 = vmatpush.msra.mxu0 0.0
    %104 = vmatpush.msra.mxu0 0.0
    %105 = vmatpush.msra.mxu0 0.0
    %106 = vmatpush.msra.mxu0 0.0
    %107 = vmatpush.msra.mxu0 0.0
    %108 = vmatpush.msra.mxu0 0.0
    %109 = vmatpush.msra.mxu0 0.0
    %110 = vmatpush.msra.mxu0 %v93
    %111 = vmatpush.msra.mxu0 %v92
    %112 = vmatpush.msra.mxu0 %v91
    %113 = vmatpush.msra.mxu0 %v90
    %114 = vmatmul.f32.gmra.mxu0 %v96
    %v115 = vpop.f32.mrf.mxu0
    %v116 = vadd.f32 0.0, %v115
    %117 = vdwg.mxu0
    %vm118 = vcmask 162816
    %v120 = vsel %vm118, %v85, 0
    %vm122 = vcmask 1043456
    %v124 = vsel %vm122, %v88, 0
    %126 = vmatpush.msra.mxu0 0.0
    %127 = vmatpush.msra.mxu0 0.0
    %128 = vmatpush.msra.mxu0 0.0
    %129 = vmatpush.msra.mxu0 0.0
    %130 = vmatpush.msra.mxu0 0.0
    %131 = vmatpush.msra.mxu0 0.0
    %132 = vmatpush.msra.mxu0 0.0
    %133 = vmatpush.msra.mxu0 0.0
    %134 = vmatpush.msra.mxu0 0.0
    %135 = vmatpush.msra.mxu0 0.0
    %136 = vmatpush.msra.mxu0 0.0
    %137 = vmatpush.msra.mxu0 0.0
    %138 = vmatpush.msra.mxu0 0.0
    %139 = vmatpush.msra.mxu0 %v124
    %140 = vmatpush.msra.mxu0 %v87
    %141 = vmatpush.msra.mxu0 %v86
    %142 = vmatmul.f32.gmra.mxu0 %v120
    %v143 = vpop.f32.mrf.mxu0
    %v144 = vadd.f32 %v116, %v143
    %145 = vdwg.mxu0
    %v146 = vld [vmem:[%s7] sm:$0x1]
    %v148 = vperm.slane %v146, 0
    %v150 = vadd.f32 %v144, %v148
    %v151 = vxor.u32 %v150, 2147483648
    %v152 = vmul.f32 %v151, 1.442695
    %v153 = vpow.pop %v152
    %v154 = vadd.f32 %v153, 1.0
    %v155 = vrcp.pop %v154
    %v156 = vmul.f32 %v154, %v155
    %v157 = vsub.f32 1.0, %v156
    %v158 = vmul.f32 %v155, %v157
    %v159 = vadd.f32 %v155, %v158
    %vm160 = vweird.f32 %v154
    %vm161 = vweird.f32 %v155
    %vm162 = vmor %vm160, %vm161
    %v163 = vsel %vm162, %v155, %v159
    %v164 = vand.u32 2147483647, %v154
    %vm165 = vcmp.eq.f32.partialorder %v164, 8.507059e+37
    %v166 = vand.u32 %v154, 2147483648
    %v167 = vor.u32 1.1754944e-38, %v166
    %v168 = vsel %vm165, %v167, %v163
    %v169 = vmul.f32 1.0, %v168
    %v170 = vtanh.pop %v150
    %v171 = vld [vmem:[%s3] sm:$0xff]
    %173 = vrot.lane.b32.xlu0 %v171, 32
    %v174 = vpop.permute.xlu0 %173
    %v176 = vmul.f32 %v169, %v174
    %178 = vrot.lane.b32.xlu0 %v170, 64
    %v179 = vpop.permute.xlu0 %178
    %v181 = vmul.f32 %v169, %v179
    %183 = vrot.lane.b32.xlu0 %v181, 32
    %v184 = vpop.permute.xlu0 %183
    %v186 = vadd.f32 %v176, %v184
    %v187 = vtanh.pop %v186
    %189 = vrot.lane.b32.xlu0 %v187, 64
    %v190 = vpop.permute.xlu0 %189
    %v192 = vmul.f32 %v169, %v190
    %v193 = vld [vmem:[#allocation2] sm:$0xff]
    %v194 = vld [vmem:[#allocation2 + $0x8] sm:$0xff]
    %v195 = vld [vmem:[#allocation2 + $0x10] sm:$0xff]
    %v196 = vld [vmem:[#allocation2 + $0x18] sm:$0xff]
    %v197 = vld [vmem:[#allocation2 + $0x20] sm:$0xff]
    %v198 = vld [vmem:[#allocation2 + $0x28] sm:$0xff]
    %v199 = vld [vmem:[#allocation2 + $0x30] sm:$0xff]
    %v200 = vld [vmem:[#allocation2 + $0x38] sm:$0xff]
    %v201 = vld [vmem:[#allocation2 + $0x40] sm:$0xff]
    %v202 = vld [vmem:[#allocation2 + $0x48] sm:$0xff]
    %v203 = vld [vmem:[#allocation2 + $0x50] sm:$0xff]
    %v204 = vld [vmem:[#allocation2 + $0x58] sm:$0xff]
    %v205 = vld [vmem:[#allocation2 + $0x60] sm:$0xff]
    %v206 = vld [vmem:[#allocation2 + $0x68] sm:$0xff]
    %v207 = vld [vmem:[#allocation2 + $0x70] sm:$0xff]
    %v208 = vld [vmem:[#allocation2 + $0x78] sm:$0xff]
    %v209 = vld [vmem:[#allocation2 + $0x80] sm:$0xff]
    %v210 = vld [vmem:[#allocation2 + $0x88] sm:$0xff]
    %v211 = vld [vmem:[#allocation2 + $0x90] sm:$0xff]
    %v212 = vld [vmem:[#allocation2 + $0x98] sm:$0xff]
    %v213 = vld [vmem:[#allocation2 + $0xa0] sm:$0xff]
    %v214 = vld [vmem:[#allocation2 + $0xa8] sm:$0xff]
    %v215 = vld [vmem:[#allocation2 + $0xb0] sm:$0xff]
    %v216 = vld [vmem:[#allocation2 + $0xb8] sm:$0xff]
    %v217 = vld [vmem:[#allocation2 + $0xc0] sm:$0xff]
    %v218 = vld [vmem:[#allocation2 + $0xc8] sm:$0xff]
    %v219 = vld [vmem:[#allocation2 + $0xd0] sm:$0xff]
    %v220 = vld [vmem:[#allocation2 + $0xd8] sm:$0xff]
    %v221 = vld [vmem:[#allocation2 + $0xe0] sm:$0xff]
    %v222 = vld [vmem:[#allocation2 + $0xe8] sm:$0xff]
    %v223 = vld [vmem:[#allocation2 + $0xf0] sm:$0xff]
    %v224 = vld [vmem:[#allocation2 + $0xf8] sm:$0xff]
    %v225 = vld [vmem:[#allocation2 + $0x100] sm:$0xff]
    %v226 = vld [vmem:[#allocation2 + $0x108] sm:$0xff]
    %v227 = vld [vmem:[#allocation2 + $0x110] sm:$0xff]
    %v228 = vld [vmem:[#allocation2 + $0x118] sm:$0xff]
    %v229 = vld [vmem:[%s1] sm:$0xff]
    %v230 = vld [vmem:[%s9] sm:$0xff]
    %v231 = vld [vmem:[%s9 + $0x8] sm:$0xff]
    %v232 = vld [vmem:[%s9 + $0x10] sm:$0xff]
    %v233 = vld [vmem:[%s9 + $0x18] sm:$0xff]
    %v234 = vld [vmem:[%s9 + $0x20] sm:$0xff]
    %v235 = vld [vmem:[%s9 + $0x28] sm:$0xff]
    %v236 = vld [vmem:[%s9 + $0x30] sm:$0xff]
    %v237 = vld [vmem:[%s9 + $0x38] sm:$0xff]
    %v238 = vld [vmem:[%s9 + $0x40] sm:$0xff]
    %v239 = vld [vmem:[%s9 + $0x48] sm:$0xff]
    %v240 = vld [vmem:[%s9 + $0x50] sm:$0xff]
    %v241 = vld [vmem:[%s9 + $0x58] sm:$0xff]
    %v242 = vld [vmem:[%s9 + $0x60] sm:$0xff]
    %v243 = vld [vmem:[%s9 + $0x68] sm:$0xff]
    %v244 = vld [vmem:[%s9 + $0x70] sm:$0xff]
    %v245 = vld [vmem:[%s9 + $0x78] sm:$0xff]
    %v246 = vld [vmem:[%s9 + $0x80] sm:$0xff]
    %v247 = vld [vmem:[%s9 + $0x88] sm:$0xff]
    %v248 = vld [vmem:[%s9 + $0x90] sm:$0xff]
    %v249 = vld [vmem:[%s9 + $0x98] sm:$0xff]
    %v250 = vld [vmem:[%s9 + $0xa0] sm:$0xff]
    %v251 = vld [vmem:[%s9 + $0xa8] sm:$0xff]
    %v252 = vld [vmem:[%s9 + $0xb0] sm:$0xff]
    %v253 = vld [vmem:[%s9 + $0xb8] sm:$0xff]
    %v254 = vld [vmem:[%s9 + $0xc0] sm:$0xff]
    %v255 = vld [vmem:[%s9 + $0xc8] sm:$0xff]
    %v256 = vld [vmem:[%s9 + $0xd0] sm:$0xff]
    %v257 = vld [vmem:[%s9 + $0xd8] sm:$0xff]
    %v258 = vld [vmem:[%s9 + $0xe0] sm:$0xff]
    %v259 = vld [vmem:[%s9 + $0xe8] sm:$0xff]
    %v260 = vld [vmem:[%s9 + $0xf0] sm:$0xff]
    %v261 = vld [vmem:[%s9 + $0xf8] sm:$0xff]
    %v262 = vld [vmem:[%s9 + $0x100] sm:$0xff]
    %v263 = vld [vmem:[%s9 + $0x108] sm:$0xff]
    %v264 = vld [vmem:[%s9 + $0x110] sm:$0xff]
    %v265 = vld [vmem:[%s9 + $0x118] sm:$0xff]
    %v266 = vld [vmem:[%s9 + $0x120] sm:$0x3]
    %v267 = vld [vmem:[%s9 + $0x128] sm:$0x3]
    %v268 = vld [vmem:[%s9 + $0x130] sm:$0x3]
    %v269 = vld [vmem:[%s9 + $0x138] sm:$0x3]
    %v270 = vld [vmem:[%s9 + $0x140] sm:$0x3]
    %v271 = vld [vmem:[%s9 + $0x148] sm:$0x3]
    %v272 = vld [vmem:[%s9 + $0x150] sm:$0x3]
    %v273 = vld [vmem:[%s9 + $0x158] sm:$0x3]
    %v274 = vld [vmem:[%s9 + $0x160] sm:$0x3]
    %vm275 = vcmask 277504
    %v277 = vsel %vm275, %v229, 0
    %vm279 = vcmask 1041408
    %v281 = vsel %vm279, %v266, 0
    %v284 = vsel %vm279, %v267, 0
    %v287 = vsel %vm279, %v268, 0
    %v290 = vsel %vm279, %v269, 0
    %v293 = vsel %vm279, %v270, 0
    %v296 = vsel %vm279, %v271, 0
    %v299 = vsel %vm279, %v272, 0
    %v302 = vsel %vm279, %v273, 0
    %v305 = vsel %vm279, %v274, 0
    %307 = vmatpush.msra.mxu0 0.0
    %308 = vmatpush.msra.mxu0 0.0
    %309 = vmatpush.msra.mxu0 0.0
    %310 = vmatpush.msra.mxu0 0.0
    %311 = vmatpush.msra.mxu0 0.0
    %312 = vmatpush.msra.mxu0 0.0
    %313 = vmatpush.msra.mxu0 0.0
    %314 = vmatpush.msra.mxu0 0.0
    %315 = vmatpush.msra.mxu0 0.0
    %316 = vmatpush.msra.mxu0 0.0
    %317 = vmatpush.msra.mxu0 0.0
    %318 = vmatpush.msra.mxu0 %v281
    %319 = vmatpush.msra.mxu0 %v257
    %320 = vmatpush.msra.mxu0 %v248
    %321 = vmatpush.msra.mxu0 %v239
    %322 = vmatpush.msra.mxu0 %v230
    %323 = vmatmul.f32.gmra.mxu0 %v277
    %v324 = vpop.f32.mrf.mxu0
    %v325 = vadd.f32 0.0, %v324
    %326 = vdwg.mxu0
    %327 = vmatpush.msra.mxu0 0.0
    %328 = vmatpush.msra.mxu0 0.0
    %329 = vmatpush.msra.mxu0 0.0
    %330 = vmatpush.msra.mxu0 0.0
    %331 = vmatpush.msra.mxu0 0.0
    %332 = vmatpush.msra.mxu0 0.0
    %333 = vmatpush.msra.mxu0 0.0
    %334 = vmatpush.msra.mxu0 0.0
    %335 = vmatpush.msra.mxu0 0.0
    %336 = vmatpush.msra.mxu0 0.0
    %337 = vmatpush.msra.mxu0 0.0
    %338 = vmatpush.msra.mxu0 %v284
    %339 = vmatpush.msra.mxu0 %v258
    %340 = vmatpush.msra.mxu0 %v249
    %341 = vmatpush.msra.mxu0 %v240
    %342 = vmatpush.msra.mxu0 %v231
    %343 = vmatmul.f32.gmra.mxu0 %v277
    %v344 = vpop.f32.mrf.mxu0
    %v345 = vadd.f32 0.0, %v344
    %346 = vdwg.mxu0
    %347 = vmatpush.msra.mxu0 0.0
    %348 = vmatpush.msra.mxu0 0.0
    %349 = vmatpush.msra.mxu0 0.0
    %350 = vmatpush.msra.mxu0 0.0
    %351 = vmatpush.msra.mxu0 0.0
    %352 = vmatpush.msra.mxu0 0.0
    %353 = vmatpush.msra.mxu0 0.0
    %354 = vmatpush.msra.mxu0 0.0
    %355 = vmatpush.msra.mxu0 0.0
    %356 = vmatpush.msra.mxu0 0.0
    %357 = vmatpush.msra.mxu0 0.0
    %358 = vmatpush.msra.mxu0 %v287
    %359 = vmatpush.msra.mxu0 %v259
    %360 = vmatpush.msra.mxu0 %v250
    %361 = vmatpush.msra.mxu0 %v241
    %362 = vmatpush.msra.mxu0 %v232
    %363 = vmatmul.f32.gmra.mxu0 %v277
    %v364 = vpop.f32.mrf.mxu0
    %v365 = vadd.f32 0.0, %v364
    %366 = vdwg.mxu0
    %367 = vmatpush.msra.mxu0 0.0
    %368 = vmatpush.msra.mxu0 0.0
    %369 = vmatpush.msra.mxu0 0.0
    %370 = vmatpush.msra.mxu0 0.0
    %371 = vmatpush.msra.mxu0 0.0
    %372 = vmatpush.msra.mxu0 0.0
    %373 = vmatpush.msra.mxu0 0.0
    %374 = vmatpush.msra.mxu0 0.0
    %375 = vmatpush.msra.mxu0 0.0
    %376 = vmatpush.msra.mxu0 0.0
    %377 = vmatpush.msra.mxu0 0.0
    %378 = vmatpush.msra.mxu0 %v290
    %379 = vmatpush.msra.mxu0 %v260
    %380 = vmatpush.msra.mxu0 %v251
    %381 = vmatpush.msra.mxu0 %v242
    %382 = vmatpush.msra.mxu0 %v233
    %383 = vmatmul.f32.gmra.mxu0 %v277
    %v384 = vpop.f32.mrf.mxu0
    %v385 = vadd.f32 0.0, %v384
    %386 = vdwg.mxu0
    %387 = vmatpush.msra.mxu0 0.0
    %388 = vmatpush.msra.mxu0 0.0
    %389 = vmatpush.msra.mxu0 0.0
    %390 = vmatpush.msra.mxu0 0.0
    %391 = vmatpush.msra.mxu0 0.0
    %392 = vmatpush.msra.mxu0 0.0
    %393 = vmatpush.msra.mxu0 0.0
    %394 = vmatpush.msra.mxu0 0.0
    %395 = vmatpush.msra.mxu0 0.0
    %396 = vmatpush.msra.mxu0 0.0
    %397 = vmatpush.msra.mxu0 0.0
    %398 = vmatpush.msra.mxu0 %v293
    %399 = vmatpush.msra.mxu0 %v261
    %400 = vmatpush.msra.mxu0 %v252
    %401 = vmatpush.msra.mxu0 %v243
    %402 = vmatpush.msra.mxu0 %v234
    %403 = vmatmul.f32.gmra.mxu0 %v277
    %v404 = vpop.f32.mrf.mxu0
    %v405 = vadd.f32 0.0, %v404
    %406 = vdwg.mxu0
    %407 = vmatpush.msra.mxu0 0.0
    %408 = vmatpush.msra.mxu0 0.0
    %409 = vmatpush.msra.mxu0 0.0
    %410 = vmatpush.msra.mxu0 0.0
    %411 = vmatpush.msra.mxu0 0.0
    %412 = vmatpush.msra.mxu0 0.0
    %413 = vmatpush.msra.mxu0 0.0
    %414 = vmatpush.msra.mxu0 0.0
    %415 = vmatpush.msra.mxu0 0.0
    %416 = vmatpush.msra.mxu0 0.0
    %417 = vmatpush.msra.mxu0 0.0
    %418 = vmatpush.msra.mxu0 %v296
    %419 = vmatpush.msra.mxu0 %v262
    %420 = vmatpush.msra.mxu0 %v253
    %421 = vmatpush.msra.mxu0 %v244
    %422 = vmatpush.msra.mxu0 %v235
    %423 = vmatmul.f32.gmra.mxu0 %v277
    %v424 = vpop.f32.mrf.mxu0
    %v425 = vadd.f32 0.0, %v424
    %426 = vdwg.mxu0
    %427 = vmatpush.msra.mxu0 0.0
    %428 = vmatpush.msra.mxu0 0.0
    %429 = vmatpush.msra.mxu0 0.0
    %430 = vmatpush.msra.mxu0 0.0
    %431 = vmatpush.msra.mxu0 0.0
    %432 = vmatpush.msra.mxu0 0.0
    %433 = vmatpush.msra.mxu0 0.0
    %434 = vmatpush.msra.mxu0 0.0
    %435 = vmatpush.msra.mxu0 0.0
    %436 = vmatpush.msra.mxu0 0.0
    %437 = vmatpush.msra.mxu0 0.0
    %438 = vmatpush.msra.mxu0 %v299
    %439 = vmatpush.msra.mxu0 %v263
    %440 = vmatpush.msra.mxu0 %v254
    %441 = vmatpush.msra.mxu0 %v245
    %442 = vmatpush.msra.mxu0 %v236
    %443 = vmatmul.f32.gmra.mxu0 %v277
    %v444 = vpop.f32.mrf.mxu0
    %v445 = vadd.f32 0.0, %v444
    %446 = vdwg.mxu0
    %447 = vmatpush.msra.mxu0 0.0
    %448 = vmatpush.msra.mxu0 0.0
    %449 = vmatpush.msra.mxu0 0.0
    %450 = vmatpush.msra.mxu0 0.0
    %451 = vmatpush.msra.mxu0 0.0
    %452 = vmatpush.msra.mxu0 0.0
    %453 = vmatpush.msra.mxu0 0.0
    %454 = vmatpush.msra.mxu0 0.0
    %455 = vmatpush.msra.mxu0 0.0
    %456 = vmatpush.msra.mxu0 0.0
    %457 = vmatpush.msra.mxu0 0.0
    %458 = vmatpush.msra.mxu0 %v302
    %459 = vmatpush.msra.mxu0 %v264
    %460 = vmatpush.msra.mxu0 %v255
    %461 = vmatpush.msra.mxu0 %v246
    %462 = vmatpush.msra.mxu0 %v237
    %463 = vmatmul.f32.gmra.mxu0 %v277
    %v464 = vpop.f32.mrf.mxu0
    %v465 = vadd.f32 0.0, %v464
    %466 = vdwg.mxu0
    %467 = vmatpush.msra.mxu0 0.0
    %468 = vmatpush.msra.mxu0 0.0
    %469 = vmatpush.msra.mxu0 0.0
    %470 = vmatpush.msra.mxu0 0.0
    %471 = vmatpush.msra.mxu0 0.0
    %472 = vmatpush.msra.mxu0 0.0
    %473 = vmatpush.msra.mxu0 0.0
    %474 = vmatpush.msra.mxu0 0.0
    %475 = vmatpush.msra.mxu0 0.0
    %476 = vmatpush.msra.mxu0 0.0
    %477 = vmatpush.msra.mxu0 0.0
    %478 = vmatpush.msra.mxu0 %v305
    %479 = vmatpush.msra.mxu0 %v265
    %480 = vmatpush.msra.mxu0 %v256
    %481 = vmatpush.msra.mxu0 %v247
    %482 = vmatpush.msra.mxu0 %v238
    %483 = vmatmul.f32.gmra.mxu0 %v277
    %v484 = vpop.f32.mrf.mxu0
    %v485 = vadd.f32 0.0, %v484
    %486 = vdwg.mxu0
    %488 = vrot.lane.b32.xlu0 %v192, 32
    %v489 = vpop.permute.xlu0 %488
    %v490 = vsel %vm94, %v489, 0
    %492 = vmatpush.msra.mxu0 0.0
    %493 = vmatpush.msra.mxu0 0.0
    %494 = vmatpush.msra.mxu0 0.0
    %495 = vmatpush.msra.mxu0 0.0
    %496 = vmatpush.msra.mxu0 0.0
    %497 = vmatpush.msra.mxu0 0.0
    %498 = vmatpush.msra.mxu0 0.0
    %499 = vmatpush.msra.mxu0 0.0
    %500 = vmatpush.msra.mxu0 0.0
    %501 = vmatpush.msra.mxu0 0.0
    %502 = vmatpush.msra.mxu0 0.0
    %503 = vmatpush.msra.mxu0 0.0
    %504 = vmatpush.msra.mxu0 %v220
    %505 = vmatpush.msra.mxu0 %v211
    %506 = vmatpush.msra.mxu0 %v202
    %507 = vmatpush.msra.mxu0 %v193
    %508 = vmatmul.f32.gmra.mxu0 %v490
    %v509 = vpop.f32.mrf.mxu0
    %v510 = vadd.f32 %v325, %v509
    %511 = vdwg.mxu0
    %512 = vmatpush.msra.mxu0 0.0
    %513 = vmatpush.msra.mxu0 0.0
    %514 = vmatpush.msra.mxu0 0.0
    %515 = vmatpush.msra.mxu0 0.0
    %516 = vmatpush.msra.mxu0 0.0
    %517 = vmatpush.msra.mxu0 0.0
    %518 = vmatpush.msra.mxu0 0.0
    %519 = vmatpush.msra.mxu0 0.0
    %520 = vmatpush.msra.mxu0 0.0
    %521 = vmatpush.msra.mxu0 0.0
    %522 = vmatpush.msra.mxu0 0.0
    %523 = vmatpush.msra.mxu0 0.0
    %524 = vmatpush.msra.mxu0 %v221
    %525 = vmatpush.msra.mxu0 %v212
    %526 = vmatpush.msra.mxu0 %v203
    %527 = vmatpush.msra.mxu0 %v194
    %528 = vmatmul.f32.gmra.mxu0 %v490
    %v529 = vpop.f32.mrf.mxu0
    %v530 = vadd.f32 %v345, %v529
    %531 = vdwg.mxu0
    %532 = vmatpush.msra.mxu0 0.0
    %533 = vmatpush.msra.mxu0 0.0
    %534 = vmatpush.msra.mxu0 0.0
    %535 = vmatpush.msra.mxu0 0.0
    %536 = vmatpush.msra.mxu0 0.0
    %537 = vmatpush.msra.mxu0 0.0
    %538 = vmatpush.msra.mxu0 0.0
    %539 = vmatpush.msra.mxu0 0.0
    %540 = vmatpush.msra.mxu0 0.0
    %541 = vmatpush.msra.mxu0 0.0
    %542 = vmatpush.msra.mxu0 0.0
    %543 = vmatpush.msra.mxu0 0.0
    %544 = vmatpush.msra.mxu0 %v222
    %545 = vmatpush.msra.mxu0 %v213
    %546 = vmatpush.msra.mxu0 %v204
    %547 = vmatpush.msra.mxu0 %v195
    %548 = vmatmul.f32.gmra.mxu0 %v490
    %v549 = vpop.f32.mrf.mxu0
    %v550 = vadd.f32 %v365, %v549
    %551 = vdwg.mxu0
    %552 = vmatpush.msra.mxu0 0.0
    %553 = vmatpush.msra.mxu0 0.0
    %554 = vmatpush.msra.mxu0 0.0
    %555 = vmatpush.msra.mxu0 0.0
    %556 = vmatpush.msra.mxu0 0.0
    %557 = vmatpush.msra.mxu0 0.0
    %558 = vmatpush.msra.mxu0 0.0
    %559 = vmatpush.msra.mxu0 0.0
    %560 = vmatpush.msra.mxu0 0.0
    %561 = vmatpush.msra.mxu0 0.0
    %562 = vmatpush.msra.mxu0 0.0
    %563 = vmatpush.msra.mxu0 0.0
    %564 = vmatpush.msra.mxu0 %v223
    %565 = vmatpush.msra.mxu0 %v214
    %566 = vmatpush.msra.mxu0 %v205
    %567 = vmatpush.msra.mxu0 %v196
    %568 = vmatmul.f32.gmra.mxu0 %v490
    %v569 = vpop.f32.mrf.mxu0
    %v570 = vadd.f32 %v385, %v569
    %571 = vdwg.mxu0
    %572 = vmatpush.msra.mxu0 0.0
    %573 = vmatpush.msra.mxu0 0.0
    %574 = vmatpush.msra.mxu0 0.0
    %575 = vmatpush.msra.mxu0 0.0
    %576 = vmatpush.msra.mxu0 0.0
    %577 = vmatpush.msra.mxu0 0.0
    %578 = vmatpush.msra.mxu0 0.0
    %579 = vmatpush.msra.mxu0 0.0
    %580 = vmatpush.msra.mxu0 0.0
    %581 = vmatpush.msra.mxu0 0.0
    %582 = vmatpush.msra.mxu0 0.0
    %583 = vmatpush.msra.mxu0 0.0
    %584 = vmatpush.msra.mxu0 %v224
    %585 = vmatpush.msra.mxu0 %v215
    %586 = vmatpush.msra.mxu0 %v206
    %587 = vmatpush.msra.mxu0 %v197
    %588 = vmatmul.f32.gmra.mxu0 %v490
    %v589 = vpop.f32.mrf.mxu0
    %v590 = vadd.f32 %v405, %v589
    %591 = vdwg.mxu0
    %592 = vmatpush.msra.mxu0 0.0
    %593 = vmatpush.msra.mxu0 0.0
    %594 = vmatpush.msra.mxu0 0.0
    %595 = vmatpush.msra.mxu0 0.0
    %596 = vmatpush.msra.mxu0 0.0
    %597 = vmatpush.msra.mxu0 0.0
    %598 = vmatpush.msra.mxu0 0.0
    %599 = vmatpush.msra.mxu0 0.0
    %600 = vmatpush.msra.mxu0 0.0
    %601 = vmatpush.msra.mxu0 0.0
    %602 = vmatpush.msra.mxu0 0.0
    %603 = vmatpush.msra.mxu0 0.0
    %604 = vmatpush.msra.mxu0 %v225
    %605 = vmatpush.msra.mxu0 %v216
    %606 = vmatpush.msra.mxu0 %v207
    %607 = vmatpush.msra.mxu0 %v198
    %608 = vmatmul.f32.gmra.mxu0 %v490
    %v609 = vpop.f32.mrf.mxu0
    %v610 = vadd.f32 %v425, %v609
    %611 = vdwg.mxu0
    %612 = vmatpush.msra.mxu0 0.0
    %613 = vmatpush.msra.mxu0 0.0
    %614 = vmatpush.msra.mxu0 0.0
    %615 = vmatpush.msra.mxu0 0.0
    %616 = vmatpush.msra.mxu0 0.0
    %617 = vmatpush.msra.mxu0 0.0
    %618 = vmatpush.msra.mxu0 0.0
    %619 = vmatpush.msra.mxu0 0.0
    %620 = vmatpush.msra.mxu0 0.0
    %621 = vmatpush.msra.mxu0 0.0
    %622 = vmatpush.msra.mxu0 0.0
    %623 = vmatpush.msra.mxu0 0.0
    %624 = vmatpush.msra.mxu0 %v226
    %625 = vmatpush.msra.mxu0 %v217
    %626 = vmatpush.msra.mxu0 %v208
    %627 = vmatpush.msra.mxu0 %v199
    %628 = vmatmul.f32.gmra.mxu0 %v490
    %v629 = vpop.f32.mrf.mxu0
    %v630 = vadd.f32 %v445, %v629
    %631 = vdwg.mxu0
    %632 = vmatpush.msra.mxu0 0.0
    %633 = vmatpush.msra.mxu0 0.0
    %634 = vmatpush.msra.mxu0 0.0
    %635 = vmatpush.msra.mxu0 0.0
    %636 = vmatpush.msra.mxu0 0.0
    %637 = vmatpush.msra.mxu0 0.0
    %638 = vmatpush.msra.mxu0 0.0
    %639 = vmatpush.msra.mxu0 0.0
    %640 = vmatpush.msra.mxu0 0.0
    %641 = vmatpush.msra.mxu0 0.0
    %642 = vmatpush.msra.mxu0 0.0
    %643 = vmatpush.msra.mxu0 0.0
    %644 = vmatpush.msra.mxu0 %v227
    %645 = vmatpush.msra.mxu0 %v218
    %646 = vmatpush.msra.mxu0 %v209
    %647 = vmatpush.msra.mxu0 %v200
    %648 = vmatmul.f32.gmra.mxu0 %v490
    %v649 = vpop.f32.mrf.mxu0
    %v650 = vadd.f32 %v465, %v649
    %651 = vdwg.mxu0
    %652 = vmatpush.msra.mxu0 0.0
    %653 = vmatpush.msra.mxu0 0.0
    %654 = vmatpush.msra.mxu0 0.0
    %655 = vmatpush.msra.mxu0 0.0
    %656 = vmatpush.msra.mxu0 0.0
    %657 = vmatpush.msra.mxu0 0.0
    %658 = vmatpush.msra.mxu0 0.0
    %659 = vmatpush.msra.mxu0 0.0
    %660 = vmatpush.msra.mxu0 0.0
    %661 = vmatpush.msra.mxu0 0.0
    %662 = vmatpush.msra.mxu0 0.0
    %663 = vmatpush.msra.mxu0 0.0
    %664 = vmatpush.msra.mxu0 %v228
    %665 = vmatpush.msra.mxu0 %v219
    %666 = vmatpush.msra.mxu0 %v210
    %667 = vmatpush.msra.mxu0 %v201
    %668 = vmatmul.f32.gmra.mxu0 %v490
    %v669 = vpop.f32.mrf.mxu0
    %v670 = vadd.f32 %v485, %v669
    %671 = vdwg.mxu0
    %v672 = vld [vmem:[%s10] sm:$0xff]
    %v673 = vld [vmem:[%s10 + $0x8] sm:$0x1]
    %v676 = vperm.slane %v672, 0
    %v677 = vperm.slane %v672, 1
    %v678 = vperm.slane %v672, 2
    %v679 = vperm.slane %v672, 3
    %v680 = vperm.slane %v672, 4
    %v681 = vperm.slane %v672, 5
    %v682 = vperm.slane %v672, 6
    %v683 = vperm.slane %v672, 7
    %v684 = vperm.slane %v673, 0
    %v694 = vadd.f32 %v510, %v676
    %v695 = vadd.f32 %v530, %v677
    %v696 = vadd.f32 %v550, %v678
    %v697 = vadd.f32 %v570, %v679
    %v698 = vadd.f32 %v590, %v680
    %v699 = vadd.f32 %v610, %v681
    %v700 = vadd.f32 %v630, %v682
    %v701 = vadd.f32 %v650, %v683
    %v702 = vadd.f32 %v670, %v684
    %v703 = vmax.f32 %v695, 0.0
    %v704 = vmax.f32 %v696, 0.0
    %v705 = vmax.f32 %v697, 0.0
    %v706 = vmax.f32 %v698, 0.0
    %v707 = vmax.f32 %v699, 0.0
    %v708 = vmax.f32 %v700, 0.0
    %v709 = vmax.f32 %v701, 0.0
    %v710 = vmax.f32 %v702, 0.0
    %v711 = vld [vmem:[#allocation5] sm:$0xff]
    %v712 = vld [vmem:[#allocation5 + $0x8] sm:$0xff]
    %v713 = vld [vmem:[#allocation5 + $0x10] sm:$0xff]
    %v714 = vld [vmem:[#allocation5 + $0x18] sm:$0xff]
    %v715 = vld [vmem:[#allocation5 + $0x20] sm:$0xff]
    %v716 = vld [vmem:[#allocation5 + $0x28] sm:$0xff]
    %v717 = vld [vmem:[#allocation5 + $0x30] sm:$0xff]
    %v718 = vld [vmem:[#allocation5 + $0x38] sm:$0xff]
    %v719 = vld [vmem:[#allocation5 + $0x40] sm:$0xff]
    %v720 = vld [vmem:[#allocation5 + $0x48] sm:$0xff]
    %v721 = vld [vmem:[#allocation5 + $0x50] sm:$0xff]
    %v722 = vld [vmem:[#allocation5 + $0x58] sm:$0xff]
    %v723 = vld [vmem:[#allocation5 + $0x60] sm:$0xff]
    %v724 = vld [vmem:[#allocation5 + $0x68] sm:$0xff]
    %v725 = vld [vmem:[#allocation5 + $0x70] sm:$0xff]
    %v726 = vld [vmem:[#allocation5 + $0x78] sm:$0xff]
    %v727 = vld [vmem:[#allocation5 + $0x80] sm:$0xff]
    %v728 = vld [vmem:[#allocation5 + $0x88] sm:$0xff]
    %v729 = vld [vmem:[#allocation5 + $0x90] sm:$0xff]
    %v730 = vld [vmem:[#allocation5 + $0x98] sm:$0xff]
    %v731 = vld [vmem:[#allocation5 + $0xa0] sm:$0xff]
    %v732 = vld [vmem:[#allocation5 + $0xa8] sm:$0xff]
    %v733 = vld [vmem:[#allocation5 + $0xb0] sm:$0xff]
    %v734 = vld [vmem:[#allocation5 + $0xb8] sm:$0xff]
    %v735 = vld [vmem:[#allocation5 + $0xc0] sm:$0xff]
    %v736 = vld [vmem:[#allocation5 + $0xc8] sm:$0xff]
    %v737 = vld [vmem:[#allocation5 + $0xd0] sm:$0xff]
    %v738 = vld [vmem:[#allocation5 + $0xd8] sm:$0xff]
    %v739 = vld [vmem:[#allocation5 + $0xe0] sm:$0xff]
    %v740 = vld [vmem:[#allocation5 + $0xe8] sm:$0xff]
    %v741 = vld [vmem:[#allocation5 + $0xf0] sm:$0xff]
    %v742 = vld [vmem:[#allocation5 + $0xf8] sm:$0xff]
    %v743 = vld [vmem:[#allocation5 + $0x100] sm:$0xff]
    %v744 = vld [vmem:[#allocation5 + $0x108] sm:$0xff]
    %v745 = vld [vmem:[#allocation5 + $0x110] sm:$0xff]
    %v746 = vld [vmem:[#allocation5 + $0x118] sm:$0xff]
    %v747 = vld [vmem:[#allocation5 + $0x120] sm:$0xff]
    %v748 = vld [vmem:[#allocation5 + $0x128] sm:$0xff]
    %v749 = vld [vmem:[#allocation5 + $0x130] sm:$0xff]
    %v750 = vld [vmem:[#allocation5 + $0x138] sm:$0xff]
    %v751 = vld [vmem:[#allocation5 + $0x140] sm:$0xff]
    %v752 = vld [vmem:[#allocation5 + $0x148] sm:$0xff]
    %v753 = vld [vmem:[#allocation5 + $0x150] sm:$0xff]
    %v754 = vld [vmem:[#allocation5 + $0x158] sm:$0xff]
    %v755 = vld [vmem:[#allocation5 + $0x160] sm:$0xff]
    %v756 = vld [vmem:[#allocation5 + $0x168] sm:$0xff]
    %v757 = vld [vmem:[#allocation5 + $0x170] sm:$0xff]
    %v758 = vld [vmem:[#allocation5 + $0x178] sm:$0xff]
    %v759 = vld [vmem:[#allocation5 + $0x180] sm:$0xff]
    %v760 = vld [vmem:[#allocation5 + $0x188] sm:$0xff]
    %v761 = vld [vmem:[#allocation5 + $0x190] sm:$0xff]
    %v762 = vld [vmem:[#allocation5 + $0x198] sm:$0xff]
    %v763 = vld [vmem:[#allocation5 + $0x1a0] sm:$0xff]
    %v764 = vld [vmem:[#allocation5 + $0x1a8] sm:$0xff]
    %v765 = vld [vmem:[#allocation5 + $0x1b0] sm:$0xff]
    %v766 = vld [vmem:[#allocation5 + $0x1b8] sm:$0xff]
    %v767 = vld [vmem:[#allocation5 + $0x1c0] sm:$0xff]
    %v768 = vld [vmem:[#allocation5 + $0x1c8] sm:$0xff]
    %v769 = vld [vmem:[#allocation5 + $0x1d0] sm:$0xff]
    %v770 = vld [vmem:[#allocation5 + $0x1d8] sm:$0xff]
    %v771 = vld [vmem:[#allocation5 + $0x1e0] sm:$0xff]
    %v772 = vld [vmem:[#allocation5 + $0x1e8] sm:$0xff]
    %v773 = vld [vmem:[#allocation5 + $0x1f0] sm:$0xff]
    %v774 = vld [vmem:[#allocation5 + $0x1f8] sm:$0xff]
    %v775 = vld [vmem:[#allocation5 + $0x200] sm:$0xff]
    %v776 = vld [vmem:[#allocation5 + $0x208] sm:$0xff]
    %v777 = vld [vmem:[#allocation5 + $0x210] sm:$0xff]
    %v778 = vld [vmem:[#allocation5 + $0x218] sm:$0xff]
    %v779 = vld [vmem:[#allocation5 + $0x220] sm:$0xff]
    %v780 = vld [vmem:[#allocation5 + $0x228] sm:$0xff]
    %v781 = vld [vmem:[#allocation5 + $0x230] sm:$0xff]
    %v782 = vld [vmem:[#allocation5 + $0x238] sm:$0xff]
    %v783 = vld [vmem:[#allocation5 + $0x240] sm:$0xff]
    %v784 = vld [vmem:[#allocation5 + $0x248] sm:$0xff]
    %v785 = vld [vmem:[#allocation5 + $0x250] sm:$0xff]
    %v786 = vld [vmem:[#allocation5 + $0x258] sm:$0xff]
    %v787 = vld [vmem:[#allocation5 + $0x260] sm:$0xff]
    %v788 = vld [vmem:[#allocation5 + $0x268] sm:$0xff]
    %v789 = vld [vmem:[#allocation5 + $0x270] sm:$0xff]
    %v790 = vld [vmem:[#allocation5 + $0x278] sm:$0xff]
    %v791 = vld [vmem:[#allocation5 + $0x280] sm:$0xff]
    %v792 = vld [vmem:[#allocation5 + $0x288] sm:$0xff]
    %v793 = vld [vmem:[#allocation5 + $0x290] sm:$0xff]
    %v794 = vld [vmem:[#allocation5 + $0x298] sm:$0xff]
    %v795 = vld [vmem:[#allocation5 + $0x2a0] sm:$0xff]
    %v796 = vld [vmem:[#allocation5 + $0x2a8] sm:$0xff]
    %v797 = vld [vmem:[#allocation5 + $0x2b0] sm:$0xff]
    %v798 = vld [vmem:[#allocation5 + $0x2b8] sm:$0xff]
    %v799 = vld [vmem:[#allocation5 + $0x2c0] sm:$0xff]
    %v800 = vld [vmem:[#allocation5 + $0x2c8] sm:$0xff]
    %v801 = vld [vmem:[#allocation5 + $0x2d0] sm:$0xff]
    %v802 = vld [vmem:[#allocation5 + $0x2d8] sm:$0xff]
    %v803 = vld [vmem:[#allocation5 + $0x2e0] sm:$0xff]
    %v804 = vld [vmem:[#allocation5 + $0x2e8] sm:$0xff]
    %v805 = vld [vmem:[#allocation5 + $0x2f0] sm:$0xff]
    %v806 = vld [vmem:[#allocation5 + $0x2f8] sm:$0xff]
    %v807 = vld [vmem:[#allocation5 + $0x300] sm:$0xff]
    %v808 = vld [vmem:[#allocation5 + $0x308] sm:$0xff]
    %v809 = vld [vmem:[#allocation5 + $0x310] sm:$0xff]
    %v810 = vld [vmem:[#allocation5 + $0x318] sm:$0xff]
    %v811 = vld [vmem:[#allocation5 + $0x320] sm:$0xff]
    %v812 = vld [vmem:[#allocation5 + $0x328] sm:$0xff]
    %v813 = vld [vmem:[#allocation5 + $0x330] sm:$0xff]
    %v814 = vld [vmem:[#allocation5 + $0x338] sm:$0xff]
    %v815 = vld [vmem:[#allocation5 + $0x340] sm:$0xff]
    %v816 = vld [vmem:[#allocation5 + $0x348] sm:$0xff]
    %v817 = vld [vmem:[#allocation5 + $0x350] sm:$0xff]
    %v818 = vld [vmem:[#allocation5 + $0x358] sm:$0xff]
    %v819 = vld [vmem:[#allocation5 + $0x360] sm:$0xff]
    %v820 = vld [vmem:[#allocation5 + $0x368] sm:$0xff]
    %v821 = vld [vmem:[#allocation5 + $0x370] sm:$0xff]
    %v822 = vld [vmem:[#allocation5 + $0x378] sm:$0xff]
    %v823 = vld [vmem:[#allocation5 + $0x380] sm:$0xff]
    %v824 = vld [vmem:[#allocation5 + $0x388] sm:$0xff]
    %v825 = vld [vmem:[#allocation5 + $0x390] sm:$0xff]
    %v826 = vld [vmem:[#allocation5 + $0x398] sm:$0xff]
    %v827 = vld [vmem:[#allocation5 + $0x3a0] sm:$0xff]
    %v828 = vld [vmem:[#allocation5 + $0x3a8] sm:$0xff]
    %v829 = vld [vmem:[#allocation5 + $0x3b0] sm:$0xff]
    %v830 = vld [vmem:[#allocation5 + $0x3b8] sm:$0xff]
    %v831 = vld [vmem:[#allocation5 + $0x3c0] sm:$0xff]
    %v832 = vld [vmem:[#allocation5 + $0x3c8] sm:$0xff]
    %v833 = vld [vmem:[#allocation5 + $0x3d0] sm:$0xff]
    %v834 = vld [vmem:[#allocation5 + $0x3d8] sm:$0xff]
    %v835 = vld [vmem:[#allocation5 + $0x3e0] sm:$0xff]
    %v836 = vld [vmem:[#allocation5 + $0x3e8] sm:$0xff]
    %v837 = vld [vmem:[#allocation5 + $0x3f0] sm:$0xff]
    %v838 = vld [vmem:[#allocation5 + $0x3f8] sm:$0xff]
    %v839 = vld [vmem:[%s12] sm:$0x3]
    %v841 = vperm.slane %v839, 0
    %v842 = vperm.slane %v839, 1
    %845 = vmatpush.msra.mxu0 %v741
    %846 = vmatpush.msra.mxu0 %v739
    %847 = vmatpush.msra.mxu0 %v737
    %848 = vmatpush.msra.mxu0 %v735
    %849 = vmatpush.msra.mxu0 %v733
    %850 = vmatpush.msra.mxu0 %v731
    %851 = vmatpush.msra.mxu0 %v729
    %852 = vmatpush.msra.mxu0 %v727
    %853 = vmatpush.msra.mxu0 %v725
    %854 = vmatpush.msra.mxu0 %v723
    %855 = vmatpush.msra.mxu0 %v721
    %856 = vmatpush.msra.mxu0 %v719
    %857 = vmatpush.msra.mxu0 %v717
    %858 = vmatpush.msra.mxu0 %v715
    %859 = vmatpush.msra.mxu0 %v713
    %860 = vmatpush.msra.mxu0 %v711
    %861 = vmatmul.f32.gmra.mxu0 %v703
    %v862 = vpop.f32.mrf.mxu0
    %v863 = vadd.f32 %v841, %v862
    %864 = vdwg.mxu0
    %865 = vmatpush.msra.mxu0 %v773
    %866 = vmatpush.msra.mxu0 %v771
    %867 = vmatpush.msra.mxu0 %v769
    %868 = vmatpush.msra.mxu0 %v767
    %869 = vmatpush.msra.mxu0 %v765
    %870 = vmatpush.msra.mxu0 %v763
    %871 = vmatpush.msra.mxu0 %v761
    %872 = vmatpush.msra.mxu0 %v759
    %873 = vmatpush.msra.mxu0 %v757
    %874 = vmatpush.msra.mxu0 %v755
    %875 = vmatpush.msra.mxu0 %v753
    %876 = vmatpush.msra.mxu0 %v751
    %877 = vmatpush.msra.mxu0 %v749
    %878 = vmatpush.msra.mxu0 %v747
    %879 = vmatpush.msra.mxu0 %v745
    %880 = vmatpush.msra.mxu0 %v743
    %881 = vmatmul.f32.gmra.mxu0 %v704
    %v882 = vpop.f32.mrf.mxu0
    %v883 = vadd.f32 %v863, %v882
    %884 = vdwg.mxu0
    %885 = vmatpush.msra.mxu0 %v805
    %886 = vmatpush.msra.mxu0 %v803
    %887 = vmatpush.msra.mxu0 %v801
    %888 = vmatpush.msra.mxu0 %v799
    %889 = vmatpush.msra.mxu0 %v797
    %890 = vmatpush.msra.mxu0 %v795
    %891 = vmatpush.msra.mxu0 %v793
    %892 = vmatpush.msra.mxu0 %v791
    %893 = vmatpush.msra.mxu0 %v789
    %894 = vmatpush.msra.mxu0 %v787
    %895 = vmatpush.msra.mxu0 %v785
    %896 = vmatpush.msra.mxu0 %v783
    %897 = vmatpush.msra.mxu0 %v781
    %898 = vmatpush.msra.mxu0 %v779
    %899 = vmatpush.msra.mxu0 %v777
    %900 = vmatpush.msra.mxu0 %v775
    %901 = vmatmul.f32.gmra.mxu0 %v705
    %v902 = vpop.f32.mrf.mxu0
    %v903 = vadd.f32 %v883, %v902
    %904 = vdwg.mxu0
    %905 = vmatpush.msra.mxu0 %v837
    %906 = vmatpush.msra.mxu0 %v835
    %907 = vmatpush.msra.mxu0 %v833
    %908 = vmatpush.msra.mxu0 %v831
    %909 = vmatpush.msra.mxu0 %v829
    %910 = vmatpush.msra.mxu0 %v827
    %911 = vmatpush.msra.mxu0 %v825
    %912 = vmatpush.msra.mxu0 %v823
    %913 = vmatpush.msra.mxu0 %v821
    %914 = vmatpush.msra.mxu0 %v819
    %915 = vmatpush.msra.mxu0 %v817
    %916 = vmatpush.msra.mxu0 %v815
    %917 = vmatpush.msra.mxu0 %v813
    %918 = vmatpush.msra.mxu0 %v811
    %919 = vmatpush.msra.mxu0 %v809
    %920 = vmatpush.msra.mxu0 %v807
    %921 = vmatmul.f32.gmra.mxu0 %v706
    %v922 = vpop.f32.mrf.mxu0
    %v923 = vadd.f32 %v903, %v922
    %924 = vdwg.mxu0
    %925 = vmatpush.msra.mxu0 %v742
    %926 = vmatpush.msra.mxu0 %v740
    %927 = vmatpush.msra.mxu0 %v738
    %928 = vmatpush.msra.mxu0 %v736
    %929 = vmatpush.msra.mxu0 %v734
    %930 = vmatpush.msra.mxu0 %v732
    %931 = vmatpush.msra.mxu0 %v730
    %932 = vmatpush.msra.mxu0 %v728
    %933 = vmatpush.msra.mxu0 %v726
    %934 = vmatpush.msra.mxu0 %v724
    %935 = vmatpush.msra.mxu0 %v722
    %936 = vmatpush.msra.mxu0 %v720
    %937 = vmatpush.msra.mxu0 %v718
    %938 = vmatpush.msra.mxu0 %v716
    %939 = vmatpush.msra.mxu0 %v714
    %940 = vmatpush.msra.mxu0 %v712
    %941 = vmatmul.f32.gmra.mxu0 %v703
    %v942 = vpop.f32.mrf.mxu0
    %v943 = vadd.f32 %v842, %v942
    %944 = vdwg.mxu0
    %945 = vmatpush.msra.mxu0 %v774
    %946 = vmatpush.msra.mxu0 %v772
    %947 = vmatpush.msra.mxu0 %v770
    %948 = vmatpush.msra.mxu0 %v768
    %949 = vmatpush.msra.mxu0 %v766
    %950 = vmatpush.msra.mxu0 %v764
    %951 = vmatpush.msra.mxu0 %v762
    %952 = vmatpush.msra.mxu0 %v760
    %953 = vmatpush.msra.mxu0 %v758
    %954 = vmatpush.msra.mxu0 %v756
    %955 = vmatpush.msra.mxu0 %v754
    %956 = vmatpush.msra.mxu0 %v752
    %957 = vmatpush.msra.mxu0 %v750
    %958 = vmatpush.msra.mxu0 %v748
    %959 = vmatpush.msra.mxu0 %v746
    %960 = vmatpush.msra.mxu0 %v744
    %961 = vmatmul.f32.gmra.mxu0 %v704
    %v962 = vpop.f32.mrf.mxu0
    %v963 = vadd.f32 %v943, %v962
    %964 = vdwg.mxu0
    %965 = vmatpush.msra.mxu0 %v806
    %966 = vmatpush.msra.mxu0 %v804
    %967 = vmatpush.msra.mxu0 %v802
    %968 = vmatpush.msra.mxu0 %v800
    %969 = vmatpush.msra.mxu0 %v798
    %970 = vmatpush.msra.mxu0 %v796
    %971 = vmatpush.msra.mxu0 %v794
    %972 = vmatpush.msra.mxu0 %v792
    %973 = vmatpush.msra.mxu0 %v790
    %974 = vmatpush.msra.mxu0 %v788
    %975 = vmatpush.msra.mxu0 %v786
    %976 = vmatpush.msra.mxu0 %v784
    %977 = vmatpush.msra.mxu0 %v782
    %978 = vmatpush.msra.mxu0 %v780
    %979 = vmatpush.msra.mxu0 %v778
    %980 = vmatpush.msra.mxu0 %v776
    %981 = vmatmul.f32.gmra.mxu0 %v705
    %v982 = vpop.f32.mrf.mxu0
    %v983 = vadd.f32 %v963, %v982
    %984 = vdwg.mxu0
    %985 = vmatpush.msra.mxu0 %v838
    %986 = vmatpush.msra.mxu0 %v836
    %987 = vmatpush.msra.mxu0 %v834
    %988 = vmatpush.msra.mxu0 %v832
    %989 = vmatpush.msra.mxu0 %v830
    %990 = vmatpush.msra.mxu0 %v828
    %991 = vmatpush.msra.mxu0 %v826
    %992 = vmatpush.msra.mxu0 %v824
    %993 = vmatpush.msra.mxu0 %v822
    %994 = vmatpush.msra.mxu0 %v820
    %995 = vmatpush.msra.mxu0 %v818
    %996 = vmatpush.msra.mxu0 %v816
    %997 = vmatpush.msra.mxu0 %v814
    %998 = vmatpush.msra.mxu0 %v812
    %999 = vmatpush.msra.mxu0 %v810
    %1000 = vmatpush.msra.mxu0 %v808
    %1001 = vmatmul.f32.gmra.mxu0 %v706
    %v1002 = vpop.f32.mrf.mxu0
    %v1003 = vadd.f32 %v983, %v1002
    %1004 = vdwg.mxu0
    %v1005 = vmax.f32 %v923, 0.0
    %v1006 = vmax.f32 %v1003, 0.0
    %1007 = vst [vmem:[#allocation7] sm:$0xff] %v1005
    %1008 = vst [vmem:[#allocation7 + $0x8] sm:$0xff] %v1006
    %v1009 = vmul.f32 %v1005, 2.5
    %v1010 = vmul.f32 %v1006, 2.5
    %v1011 = vmin.f32 %v1009, 88.72284
    %v1012 = vmin.f32 %v1010, 88.72284
    %v1013 = vld [vmem:[%s4] sm:$0xff]
    %v1014 = vld [vmem:[%s4 + $0x8] sm:$0xff]
    %v1015 = vadd.f32 %v1011, %v1013
    %v1016 = vadd.f32 %v1012, %v1014
    %v1017 = vlaneseq
    %v1018 = vand.u32 %v1017, 127
    %v1019 = vadd.s32 %v1018, 128
    %vm1020 = vcmp.ge.f32.partialorder %v1015, %v1016
    %v1021 = vsel %vm1020, %v1015, %v1016
    %v1022 = vsel %vm1020, %v1018, %v1019
    %1023 = vmax.index.xlane.f32.xlu0 %v1021
    %v1024 = vpop.xlane.xlu0 %1023
    %1025 = vset.pattern.permute.xlu0 %v1024
    %1026 = vperm.xlu0 %1025, %v1022
    %v1027 = vpop.permute.xlu0 %1026
    %v1028 = vand.u32 %v1027, 15
    %v1029 = vcvt.s32.f32 %v1028
    %v1030 = vmul.f32 %v1029, 0.0625
    %v1031 = vshra.s32 %v1027, 4
    %v1032 = vcvt.s32.f32 %v1031
    %v1033 = vmul.f32 %v1032, 0.0625
    %v1034 = vld [vmem:[%s13] sm:$0xff]
    %v1035 = vld [vmem:[%s13 + $0x8] sm:$0xff]
    %v1036 = vld [vmem:[%s13 + $0x10] sm:$0xff]
    %v1037 = vld [vmem:[%s13 + $0x18] sm:$0xff]
    %v1038 = vld [vmem:[%s13 + $0x20] sm:$0xff]
    %v1039 = vld [vmem:[%s13 + $0x28] sm:$0xff]
    %v1040 = vld [vmem:[%s13 + $0x30] sm:$0xff]
    %v1041 = vld [vmem:[%s13 + $0x38] sm:$0xff]
    %v1042 = vld [vmem:[%s13 + $0x40] sm:$0xff]
    %v1043 = vld [vmem:[%s13 + $0x48] sm:$0xff]
    %v1044 = vld [vmem:[%s13 + $0x50] sm:$0xff]
    %v1045 = vld [vmem:[%s13 + $0x58] sm:$0xff]
    %v1046 = vld [vmem:[%s13 + $0x60] sm:$0xff]
    %v1047 = vld [vmem:[%s13 + $0x68] sm:$0xff]
    %v1048 = vld [vmem:[%s13 + $0x70] sm:$0xff]
    %v1049 = vld [vmem:[%s13 + $0x78] sm:$0xff]
    %v1050 = vld [vmem:[%s13 + $0x80] sm:$0xff]
    %v1051 = vld [vmem:[%s13 + $0x88] sm:$0xff]
    %v1052 = vld [vmem:[%s13 + $0x90] sm:$0xff]
    %v1053 = vld [vmem:[%s13 + $0x98] sm:$0xff]
    %v1054 = vld [vmem:[%s13 + $0xa0] sm:$0xff]
    %v1055 = vld [vmem:[%s13 + $0xa8] sm:$0xff]
    %v1056 = vld [vmem:[%s13 + $0xb0] sm:$0xff]
    %v1057 = vld [vmem:[%s13 + $0xb8] sm:$0xff]
    %v1058 = vld [vmem:[%s13 + $0xc0] sm:$0xff]
    %v1059 = vld [vmem:[%s13 + $0xc8] sm:$0xff]
    %v1060 = vld [vmem:[%s13 + $0xd0] sm:$0xff]
    %v1061 = vld [vmem:[%s13 + $0xd8] sm:$0xff]
    %v1062 = vld [vmem:[%s13 + $0xe0] sm:$0xff]
    %v1063 = vld [vmem:[%s13 + $0xe8] sm:$0xff]
    %v1064 = vld [vmem:[%s13 + $0xf0] sm:$0xff]
    %v1065 = vld [vmem:[%s13 + $0xf8] sm:$0xff]
    %v1066 = vld [vmem:[%s13 + $0x100] sm:$0xff]
    %v1067 = vld [vmem:[%s13 + $0x108] sm:$0xff]
    %v1068 = vld [vmem:[%s13 + $0x110] sm:$0xff]
    %v1069 = vld [vmem:[%s13 + $0x118] sm:$0xff]
    %v1070 = vld [vmem:[%s13 + $0x120] sm:$0xff]
    %v1071 = vld [vmem:[%s13 + $0x128] sm:$0xff]
    %v1072 = vld [vmem:[%s13 + $0x130] sm:$0xff]
    %v1073 = vld [vmem:[%s13 + $0x138] sm:$0xff]
    %v1074 = vld [vmem:[%s13 + $0x140] sm:$0xff]
    %v1075 = vld [vmem:[%s13 + $0x148] sm:$0xff]
    %v1076 = vld [vmem:[%s13 + $0x150] sm:$0xff]
    %v1077 = vld [vmem:[%s13 + $0x158] sm:$0xff]
    %v1078 = vld [vmem:[%s13 + $0x160] sm:$0xff]
    %v1079 = vld [vmem:[%s13 + $0x168] sm:$0xff]
    %v1080 = vld [vmem:[%s13 + $0x170] sm:$0xff]
    %v1081 = vld [vmem:[%s13 + $0x178] sm:$0xff]
    %v1082 = vld [vmem:[%s13 + $0x180] sm:$0xff]
    %v1083 = vld [vmem:[%s13 + $0x188] sm:$0xff]
    %v1084 = vld [vmem:[%s13 + $0x190] sm:$0xff]
    %v1085 = vld [vmem:[%s13 + $0x198] sm:$0xff]
    %v1086 = vld [vmem:[%s13 + $0x1a0] sm:$0xff]
    %v1087 = vld [vmem:[%s13 + $0x1a8] sm:$0xff]
    %v1088 = vld [vmem:[%s13 + $0x1b0] sm:$0xff]
    %v1089 = vld [vmem:[%s13 + $0x1b8] sm:$0xff]
    %v1090 = vld [vmem:[%s13 + $0x1c0] sm:$0xff]
    %v1091 = vld [vmem:[%s13 + $0x1c8] sm:$0xff]
    %v1092 = vld [vmem:[%s13 + $0x1d0] sm:$0xff]
    %v1093 = vld [vmem:[%s13 + $0x1d8] sm:$0xff]
    %v1094 = vld [vmem:[%s13 + $0x1e0] sm:$0xff]
    %v1095 = vld [vmem:[%s13 + $0x1e8] sm:$0xff]
    %v1096 = vld [vmem:[%s13 + $0x1f0] sm:$0xff]
    %v1097 = vld [vmem:[%s13 + $0x1f8] sm:$0xff]
    %v1098 = vld [vmem:[%s14] sm:$0x1]
    %v1100 = vperm.slane %v1098, 0
    %1102 = vmatpush.msra.mxu0 %v1049
    %1103 = vmatpush.msra.mxu0 %v1048
    %1104 = vmatpush.msra.mxu0 %v1047
    %1105 = vmatpush.msra.mxu0 %v1046
    %1106 = vmatpush.msra.mxu0 %v1045
    %1107 = vmatpush.msra.mxu0 %v1044
    %1108 = vmatpush.msra.mxu0 %v1043
    %1109 = vmatpush.msra.mxu0 %v1042
    %1110 = vmatpush.msra.mxu0 %v1041
    %1111 = vmatpush.msra.mxu0 %v1040
    %1112 = vmatpush.msra.mxu0 %v1039
    %1113 = vmatpush.msra.mxu0 %v1038
    %1114 = vmatpush.msra.mxu0 %v1037
    %1115 = vmatpush.msra.mxu0 %v1036
    %1116 = vmatpush.msra.mxu0 %v1035
    %1117 = vmatpush.msra.mxu0 %v1034
    %1118 = vmatmul.f32.gmra.mxu0 %v707
    %v1119 = vpop.f32.mrf.mxu0
    %v1120 = vadd.f32 %v1100, %v1119
    %1121 = vdwg.mxu0
    %1122 = vmatpush.msra.mxu0 %v1065
    %1123 = vmatpush.msra.mxu0 %v1064
    %1124 = vmatpush.msra.mxu0 %v1063
    %1125 = vmatpush.msra.mxu0 %v1062
    %1126 = vmatpush.msra.mxu0 %v1061
    %1127 = vmatpush.msra.mxu0 %v1060
    %1128 = vmatpush.msra.mxu0 %v1059
    %1129 = vmatpush.msra.mxu0 %v1058
    %1130 = vmatpush.msra.mxu0 %v1057
    %1131 = vmatpush.msra.mxu0 %v1056
    %1132 = vmatpush.msra.mxu0 %v1055
    %1133 = vmatpush.msra.mxu0 %v1054
    %1134 = vmatpush.msra.mxu0 %v1053
    %1135 = vmatpush.msra.mxu0 %v1052
    %1136 = vmatpush.msra.mxu0 %v1051
    %1137 = vmatpush.msra.mxu0 %v1050
    %1138 = vmatmul.f32.gmra.mxu0 %v708
    %v1139 = vpop.f32.mrf.mxu0
    %v1140 = vadd.f32 %v1120, %v1139
    %1141 = vdwg.mxu0
    %1142 = vmatpush.msra.mxu0 %v1081
    %1143 = vmatpush.msra.mxu0 %v1080
    %1144 = vmatpush.msra.mxu0 %v1079
    %1145 = vmatpush.msra.mxu0 %v1078
    %1146 = vmatpush.msra.mxu0 %v1077
    %1147 = vmatpush.msra.mxu0 %v1076
    %1148 = vmatpush.msra.mxu0 %v1075
    %1149 = vmatpush.msra.mxu0 %v1074
    %1150 = vmatpush.msra.mxu0 %v1073
    %1151 = vmatpush.msra.mxu0 %v1072
    %1152 = vmatpush.msra.mxu0 %v1071
    %1153 = vmatpush.msra.mxu0 %v1070
    %1154 = vmatpush.msra.mxu0 %v1069
    %1155 = vmatpush.msra.mxu0 %v1068
    %1156 = vmatpush.msra.mxu0 %v1067
    %1157 = vmatpush.msra.mxu0 %v1066
    %1158 = vmatmul.f32.gmra.mxu0 %v709
    %v1159 = vpop.f32.mrf.mxu0
    %v1160 = vadd.f32 %v1140, %v1159
    %1161 = vdwg.mxu0
    %1162 = vmatpush.msra.mxu0 %v1097
    %1163 = vmatpush.msra.mxu0 %v1096
    %1164 = vmatpush.msra.mxu0 %v1095
    %1165 = vmatpush.msra.mxu0 %v1094
    %1166 = vmatpush.msra.mxu0 %v1093
    %1167 = vmatpush.msra.mxu0 %v1092
    %1168 = vmatpush.msra.mxu0 %v1091
    %1169 = vmatpush.msra.mxu0 %v1090
    %1170 = vmatpush.msra.mxu0 %v1089
    %1171 = vmatpush.msra.mxu0 %v1088
    %1172 = vmatpush.msra.mxu0 %v1087
    %1173 = vmatpush.msra.mxu0 %v1086
    %1174 = vmatpush.msra.mxu0 %v1085
    %1175 = vmatpush.msra.mxu0 %v1084
    %1176 = vmatpush.msra.mxu0 %v1083
    %1177 = vmatpush.msra.mxu0 %v1082
    %1178 = vmatmul.f32.gmra.mxu0 %v710
    %v1179 = vpop.f32.mrf.mxu0
    %v1180 = vadd.f32 %v1160, %v1179
    %1181 = vdwg.mxu0
    %v1182 = vxor.u32 %v1180, 2147483648
    %v1183 = vmul.f32 %v1182, 1.442695
    %v1184 = vpow.pop %v1183
    %v1185 = vadd.f32 %v1184, 1.0
    %v1186 = vrcp.pop %v1185
    %v1187 = vmul.f32 %v1185, %v1186
    %v1188 = vsub.f32 1.0, %v1187
    %v1189 = vmul.f32 %v1186, %v1188
    %v1190 = vadd.f32 %v1186, %v1189
    %vm1191 = vweird.f32 %v1185
    %vm1192 = vweird.f32 %v1186
    %vm1193 = vmor %vm1191, %vm1192
    %v1194 = vsel %vm1193, %v1186, %v1190
    %v1195 = vand.u32 2147483647, %v1185
    %vm1196 = vcmp.eq.f32.partialorder %v1195, 8.507059e+37
    %v1197 = vand.u32 %v1185, 2147483648
    %v1198 = vor.u32 1.1754944e-38, %v1197
    %v1199 = vsel %vm1196, %v1198, %v1194
    %v1200 = vmul.f32 1.0, %v1199
    %1201 = vrot.lane.b32.xlu0 %v192, 48
    %v1202 = vpop.permute.xlu0 %1201
    %1205 = vrot.lane.b32.xlu0 %v186, 16
    %v1206 = vpop.permute.xlu0 %1205
    %1209 = vrot.lane.b32.xlu0 %v1200, 80
    %v1210 = vpop.permute.xlu0 %1209
    %vm1212 = vcmask 130048
    %v1213 = vsel %vm1212, %v694, %v1202
    %vm1214 = vcmask 392192
    %v1215 = vsel %vm1214, %v1213, %v1206
    %vm1216 = vcmask 654336
    %v1217 = vsel %vm1216, %v1215, %v1210
    %vm1218 = vcmask 670720
    %v1219 = vsel %vm1218, %v1217, %v1030
    %vm1220 = vcmask 678912
    %v1221 = vsel %vm1220, %v1219, %v1033
    %vm1222 = vcmask 687104
    %v1223 = vsel %vm1222, %v1221, 0.0
    %1224 = vst [vmem:[%s16] sm:$0xff] %v1223
    // Predicated region
    $region70: #{decoder_rnn_forward.1} parent=1 // pred_check
      _
    $region71: #{decoder_rnn_forward.1} parent=1 // pred_check_branch
      %1226 = sbr.rel (0) target = $region73
    $region72: #{decoder_rnn_forward.1} parent=1 // pred_region
      %1228 = vsyncadd [#allocation4], 0
      %s1230 = sshll.u32 [#allocation7], 4
      %s1231 = int_to_ptr.vmem [resolvable:$true] %s1230
      %s1232 = sshll.u32 %s15, 4
      %s1233 = int_to_ptr.hbm [resolvable:$true] %s1232
      %1235 = dma.vmem_to_hbm [thread:$0]  %s1231, 256, %s1233, [#allocation4]
    $region73: #{decoder_rnn_forward.1} parent=1 // pred_fallthru
      _
    // Predicated region
    $region74: #{decoder_rnn_forward.1} parent=1 // pred_check
      _
    $region75: #{decoder_rnn_forward.1} parent=1 // pred_check_branch
      %1237 = sbr.rel (0) target = $region77
    $region76: #{decoder_rnn_forward.1} parent=1 // pred_region
      _
    $region77: #{decoder_rnn_forward.1} parent=1 // pred_fallthru
      _
    // Predicated region
    $region78: #{decoder_rnn_forward.1} parent=1 // pred_check
      _
    $region79: #{decoder_rnn_forward.1} parent=1 // pred_check_branch
      %1239 = sbr.rel (0) target = $region81
    $region80: #{decoder_rnn_forward.1} parent=1 // pred_region
      %1241 = dma.done [#allocation4], 256
    $region81: #{decoder_rnn_forward.1} parent=1 // pred_fallthru
      _
    // Predicated region
    $region82: #{decoder_rnn_forward.1} parent=1 // pred_check
      _
    $region83: #{decoder_rnn_forward.1} parent=1 // pred_check_branch
      %1243 = sbr.rel (0) target = $region85
    $region84: #{decoder_rnn_forward.1} parent=1 // pred_region
      _
    $region85: #{decoder_rnn_forward.1} parent=1 // pred_fallthru
      _
    %1244 = vsyncpa [#allocation3], 1
    %1245 = vsyncpa [#allocation6], 1
    %1246 = vsyncpa [#allocation4], 1

</llo_original>
